<compile_context>
chip_gen: v5e
topology: v5e:2x2
jax: 0.10.0
libtpu: 0.0.40
codegen_flags: <defaults>
</compile_context>

<pallas_src>
import numpy as np
import jax
import jax.numpy as jnp
from jax.experimental import pallas as pl
from jax.experimental.pallas import tpu as pltpu


def _make_fused_kernel(H, W, Cin, Ctmp, Cout, b_blk, use_scratch_acc):
    """Fused conv3x3+BN+ReLU -> (dropout=id) -> conv3x3+BN+ReLU for B_blk images."""
    S = H + 2                      # rows per image in the padded layout
    M_pad = b_blk * S              # padded rows per grid step
    M_out = M_pad - 2              # matmul M (includes 2 unused seam rows/image)
    N1, N2 = W * Ctmp, W * Cout

    def kernel(x_ref, b1_ref, s1_ref, b2_ref, s2_ref, o_ref, *scratch):
        if use_scratch_acc:
            pad1_ref, pad2_ref, acc1_ref, acc2_ref = scratch
        else:
            pad1_ref, pad2_ref = scratch
            acc1_ref = acc2_ref = None

        # --- zero only the per-image halo rows (interior rows are always
        #     overwritten below).  Deliberately done every step: with a
        #     "parallel" grid axis, scratch is per-TensorCore on megacore
        #     chips and only one core ever sees program_id==0, so a
        #     pl.when(pid==0) once-only init would leave stale halos there.
        def zero_halo_rows(pad_ref, ncols):
            z2 = jnp.zeros((2, ncols), jnp.bfloat16)
            pad_ref[0:1, :] = z2[0:1]
            pad_ref[M_pad - 1:M_pad, :] = z2[0:1]
            for i in range(1, b_blk):
                # bottom halo of image i-1 and top halo of image i are adjacent
                pad_ref[i * S - 1:i * S + 1, :] = z2

        zero_halo_rows(pad1_ref, W * Cin)
        zero_halo_rows(pad2_ref, N1)

        # --- stage the input block into the row-padded, lane-dense layout ----
        for i in range(b_blk):
            pad1_ref[i * S + 1:i * S + 1 + H, :] = x_ref[i]

        def conv_bn_relu(pad_ref, b_ref, s_ref, acc_ref, write_image):
            # out[h] = sum_dy pad[h+dy] @ B[dy]; the dx/column zero padding is
            # encoded in the band structure of B.  bf16 operands, f32 accumulate.
            # TODO(synk): optionally stage concat(pad[0:M],pad[1:M+1],pad[2:M+2], axis=1)
            #             once and do a single wide-K matmul (verify with bundle dump).
            lhs0 = pad_ref[0:M_out, :]
            lhs1 = pad_ref[1:M_out + 1, :]
            lhs2 = pad_ref[2:M_out + 2, :]
            if acc_ref is None:                      # small M*N: keep acc in vregs
                acc = jnp.dot(lhs0, b_ref[0], preferred_element_type=jnp.float32)
                acc = acc + jnp.dot(lhs1, b_ref[1], preferred_element_type=jnp.float32)
                acc = acc + jnp.dot(lhs2, b_ref[2], preferred_element_type=jnp.float32)
                read = lambda i: acc[i * S:i * S + H, :]
            else:                                    # large M*N: VMEM accumulator
                acc_ref[...] = jnp.dot(lhs0, b_ref[0], preferred_element_type=jnp.float32)
                acc_ref[...] += jnp.dot(lhs1, b_ref[1], preferred_element_type=jnp.float32)
                acc_ref[...] += jnp.dot(lhs2, b_ref[2], preferred_element_type=jnp.float32)
                read = lambda i: acc_ref[i * S:i * S + H, :]
            shift = s_ref[...]                       # (1, N) f32, broadcasts over rows
            for i in range(b_blk):                   # skip the 2 seam rows per image
                write_image(i, jnp.maximum(read(i) + shift, 0.0))

        # layer 1: conv3x3 + folded-BN + ReLU  (Dropout = identity in eval mode);
        # intermediate activation stays on-chip as bf16 in the padded layout.
        def write_l1(i, v):
            pad2_ref[i * S + 1:i * S + 1 + H, :] = v.astype(jnp.bfloat16)

        conv_bn_relu(pad1_ref, b1_ref, s1_ref, acc1_ref, write_l1)

        # layer 2: conv3x3 + folded-BN + ReLU -> lane-dense f32 output block.
        def write_l2(i, v):
            o_ref[i] = v

        conv_bn_relu(pad2_ref, b2_ref, s2_ref, acc2_ref, write_l2)

    return kernel


def _band_weights(w_folded, W):
    """Expand a (3,3,Cin,Cout) kernel (BN scale already folded in) into 3 banded
    matrices B[dy] of shape (W*Cin, W*Cout) such that, in the lane-dense
    (row, W*C) layout,  out_flat[h] = sum_dy padded_rows[h+dy] @ B[dy]
    reproduces the SAME-padded 3x3 convolution."""
    Cin, Cout = w_folded.shape[2], w_folded.shape[3]
    sel = np.zeros((3, W, W), np.float32)            # sel[dx, x, w] = [x == w + dx - 1]
    for dx in range(3):
        for wp in range(W):
            x = wp + dx - 1
            if 0 <= x < W:
                sel[dx, x, wp] = 1.0
    band = jnp.einsum('dxw,qdio->qxiwo', jnp.asarray(sel), w_folded.astype(jnp.float32))
    return band.reshape(3, W * Cin, W * Cout)


def conv_block_apply(x_flat, params, *, block_images=8, accumulate_in_vmem=None):
    """Fused ConvBlock forward (eval mode) on lane-dense activations.

    x_flat: (N, H, W*Cin), channel-fastest within a row.  Returns (N, H, W*Cout) f32.
    """
    w1, shift1 = params["w1"], params["shift1"]      # BN scale already folded into w
    w2, shift2 = params["w2"], params["shift2"]
    Cin, Ctmp = w1.shape[2], w1.shape[3]
    Cout = w2.shape[3]
    N, H, WC = x_flat.shape
    assert WC % Cin == 0
    W = WC // Cin
    N1, N2 = W * Ctmp, W * Cout

    # Lane-dense output stores require W*channels to be a multiple of 128.
    assert N1 % 128 == 0 and N2 % 128 == 0, \
        "W*channels must be a multiple of 128 for unmasked lane-dense stores"
    # Banded weights scale as O(W^2*Cin*Cout); refuse shapes that would blow VMEM.
    assert (3 * W * Cin * N1 + 3 * N1 * N2) * 2 < 8 * 1024 * 1024, \
        "banded weights too large for VMEM; add W-strip tiling (see TODO) first"

    # ---- batching: B_blk images per grid step -> matmul M ~ B_blk*(H+2) -----
    b_blk = max(1, min(block_images, N))
    n_pad = (-N) % b_blk
    x_flat = x_flat.astype(jnp.bfloat16)             # bf16 MXU operands
    if n_pad:
        x_flat = jnp.concatenate(
            [x_flat, jnp.zeros((n_pad, H, WC), jnp.bfloat16)], axis=0)
    G = x_flat.shape[0] // b_blk

    S = H + 2
    M_pad = b_blk * S
    M_out = M_pad - 2
    if accumulate_in_vmem is None:
        # ~64 KiB (~16 vregs) register-accumulator budget per review.
        accumulate_in_vmem = M_out * max(N1, N2) * 4 > 64 * 1024

    # ---- host-side prep: fold BN scale into banded bf16 weights -------------
    b1 = _band_weights(w1, W).astype(jnp.bfloat16)   # (3, W*Cin,  W*Ctmp)
    b2 = _band_weights(w2, W).astype(jnp.bfloat16)   # (3, W*Ctmp, W*Cout)
    s1 = jnp.tile(shift1.astype(jnp.float32), W).reshape(1, N1)
    s2 = jnp.tile(shift2.astype(jnp.float32), W).reshape(1, N2)

    kernel = _make_fused_kernel(H, W, Cin, Ctmp, Cout, b_blk, accumulate_in_vmem)

    scratch = [pltpu.VMEM((M_pad, W * Cin), jnp.bfloat16),   # padded layer-1 input
               pltpu.VMEM((M_pad, N1), jnp.bfloat16)]        # padded intermediate
    if accumulate_in_vmem:
        scratch += [pltpu.VMEM((M_out, N1), jnp.float32),
                    pltpu.VMEM((M_out, N2), jnp.float32)]

    def build_call(single_buffer_weights):
        def const_spec(shape):
            idx = (lambda n: (0, 0, 0)) if len(shape) == 3 else (lambda n: (0, 0))
            if single_buffer_weights:
                # Constant across the grid -> no need for double buffering.
                return pl.BlockSpec(shape, idx, pipeline_mode=pl.Buffered(1))
            return pl.BlockSpec(shape, idx)

        grid_spec = pltpu.PrefetchScalarGridSpec(
            num_scalar_prefetch=0,
            grid=(G,),
            in_specs=[
                pl.BlockSpec((b_blk, H, W * Cin), lambda n: (n, 0, 0)),
                const_spec((3, W * Cin, N1)),
                const_spec((1, N1)),
                const_spec((3, N1, N2)),
                const_spec((1, N2)),
            ],
            out_specs=pl.BlockSpec((b_blk, H, N2), lambda n: (n, 0, 0)),
            scratch_shapes=scratch,
        )
        return pl.pallas_call(
            kernel,
            out_shape=jax.ShapeDtypeStruct((G * b_blk, H, N2), jnp.float32),
            grid_spec=grid_spec,
            compiler_params=pltpu.CompilerParams(
                dimension_semantics=("parallel",),
                vmem_limit_bytes=32 * 1024 * 1024),
        )

    try:
        out_flat = build_call(True)(x_flat, b1, s1, b2, s2)
    except Exception:
        # pipeline_mode=pl.Buffered(1) unsupported on this jax build -> default
        # double-buffered constant operands (slightly more VMEM, same results).
        out_flat = build_call(False)(x_flat, b1, s1, b2, s2)

    return out_flat[:N]


def conv_block_forward(x_nchw, params, **kw):
    """ConvBlock forward (eval mode) with PyTorch NCHW input/output layout."""
    N, Cin, H, W = x_nchw.shape
    # TODO(synk): across consecutive ConvBlocks keep the lane-dense (N,H,W*C)
    # layout and drop these transposes (full HBM round trips at real sizes).
    x_flat = jnp.transpose(x_nchw, (0, 2, 3, 1)).reshape(N, H, W * Cin)
    out_flat = conv_block_apply(x_flat, params, **kw)
    Cout = params["w2"].shape[3]
    out = out_flat.reshape(N, H, W, Cout)
    return jnp.transpose(out, (0, 3, 1, 2))                 # NHWC -> NCHW


def init_conv_block_params(key, in_channels, out_channels, temp_channels=None):
    """Deterministic synthetic parameters matching ConvBlock's shapes.
    Running-stat BatchNorm scale is folded into the conv weights; the remaining
    per-channel shift absorbs the conv bias, BN running mean and beta."""
    if temp_channels is None:
        temp_channels = out_channels
    k1, k2 = jax.random.split(key, 2)
    eps = 1e-5

    def layer(k, cin, cout, tag):
        kw, kb = jax.random.split(k)
        bound = 1.0 / np.sqrt(cin * 9)
        w = jax.random.uniform(kw, (3, 3, cin, cout), jnp.float32, -bound, bound)
        b = jax.random.uniform(kb, (cout,), jnp.float32, -bound, bound)
        idx = jnp.arange(cout, dtype=jnp.float32)
        gamma = 1.0 + 0.05 * idx
        beta = 0.01 * idx
        running_mean = 0.02 * (idx - cout / 2.0)
        running_var = 1.0 + 0.03 * idx
        scale = gamma / jnp.sqrt(running_var + eps)
        w_folded = w * scale                                 # fold BN scale into weights
        shift = beta + (b - running_mean) * scale
        return {f"w{tag}": w_folded, f"shift{tag}": shift}

    params = {}
    params.update(layer(k1, in_channels, temp_channels, 1))
    params.update(layer(k2, temp_channels, out_channels, 2))
    return params


def _reference_forward(x_nchw, params):
    """Pure-JAX (XLA) f32 reference for correctness checking."""
    x = jnp.transpose(x_nchw, (0, 2, 3, 1))

    def layer(x, w, shift):
        y = jax.lax.conv_general_dilated(
            x, w, window_strides=(1, 1), padding="SAME",
            dimension_numbers=("NHWC", "HWIO", "NHWC"))
        return jnp.maximum(y + shift, 0.0)

    x = layer(x, params["w1"], params["shift1"])
    x = layer(x, params["w2"], params["shift2"])
    return jnp.transpose(x, (0, 3, 1, 2))


if __name__ == "__main__":
    key = jax.random.PRNGKey(0)
    k_x, k_p, k_x2, k_p2 = jax.random.split(key, 4)

    # --- primary config (module-sized shapes) -------------------------------
    N, C_in, H, W = 2, 4, 16, 16
    C_out = 8
    x = jax.random.normal(k_x, (N, C_in, H, W), jnp.float32)
    params = init_conv_block_params(k_p, C_in, C_out)

    out = jax.block_until_ready(conv_block_forward(x, params))
    ref = jax.block_until_ready(_reference_forward(x, params))
    # bf16 MXU operands + f32 accumulation -> widened tolerance (per review).
    np.testing.assert_allclose(np.asarray(out), np.asarray(ref), rtol=2e-2, atol=2e-2)
    assert out.shape == (N, C_out, H, W)

    # --- second config: multi-step grid, batch padding, VMEM accumulator ----
    N2, C_in2, C_out2 = 5, 8, 8
    x2 = jax.random.normal(k_x2, (N2, C_in2, H, W), jnp.float32)
    params2 = init_conv_block_params(k_p2, C_in2, C_out2)
    out2 = jax.block_until_ready(
        conv_block_forward(x2, params2, block_images=4, accumulate_in_vmem=True))
    ref2 = jax.block_until_ready(_reference_forward(x2, params2))
    np.testing.assert_allclose(np.asarray(out2), np.asarray(ref2), rtol=2e-2, atol=2e-2)
    assert out2.shape == (N2, C_out2, H, W)

    print("KERNEL_OK")
</pallas_src>

<mosaic_0001>
module attributes {stable_mosaic.version = 11 : i64} {
  func.func @kernel(%arg0: i32, %arg1: memref<2x16x64xbf16, #tpu.memory_space<vmem>>, %arg2: memref<3x64x128xbf16, #tpu.memory_space<vmem>>, %arg3: memref<1x128xf32, #tpu.memory_space<vmem>>, %arg4: memref<3x128x128xbf16, #tpu.memory_space<vmem>>, %arg5: memref<1x128xf32, #tpu.memory_space<vmem>>, %arg6: memref<2x16x128xf32, #tpu.memory_space<vmem>>, %arg7: memref<36x64xbf16, #tpu.memory_space<vmem>>, %arg8: memref<36x128xbf16, #tpu.memory_space<vmem>>) attributes {dimension_semantics = [#tpu.dimension_semantics<parallel>], iteration_bounds = array<i64: 1>, scalar_prefetch = 0 : i64, scratch_operands = 2 : i64, tpu.core_type = #tpu.core_type<tc>, window_params = [{transform_indices = @transform_0, window_bounds = array<i64: 2, 16, 64>}, {pipeline_mode = #tpu.pipeline_mode<synchronous>, transform_indices = @transform_1, window_bounds = array<i64: 3, 64, 128>}, {pipeline_mode = #tpu.pipeline_mode<synchronous>, transform_indices = @transform_2, window_bounds = array<i64: 1, 128>}, {pipeline_mode = #tpu.pipeline_mode<synchronous>, transform_indices = @transform_3, window_bounds = array<i64: 3, 128, 128>}, {pipeline_mode = #tpu.pipeline_mode<synchronous>, transform_indices = @transform_4, window_bounds = array<i64: 1, 128>}, {transform_indices = @transform_5, window_bounds = array<i64: 2, 16, 128>}]} {
    %cst = arith.constant 0.000000e+00 : bf16
    %0 = vector.broadcast %cst : bf16 to vector<2x64xbf16>
    %1 = vector.extract_strided_slice %0 {offsets = [0, 0], sizes = [1, 64], strides = [1, 1]} : vector<2x64xbf16> to vector<1x64xbf16>
    %c0 = arith.constant 0 : index
    %c0_0 = arith.constant 0 : index
    %2 = vector.load %arg7[%c0, %c0_0] : memref<36x64xbf16, #tpu.memory_space<vmem>>, vector<1x64xbf16>
    tpu.vector_store %arg7[%c0, %c0_0], %1 {strides = array<i32>} : memref<36x64xbf16, #tpu.memory_space<vmem>>, vector<1x64xbf16>,
    %3 = vector.extract_strided_slice %0 {offsets = [0, 0], sizes = [1, 64], strides = [1, 1]} : vector<2x64xbf16> to vector<1x64xbf16>
    %c35 = arith.constant 35 : index
    %c0_1 = arith.constant 0 : index
    %4 = vector.load %arg7[%c35, %c0_1] : memref<36x64xbf16, #tpu.memory_space<vmem>>, vector<1x64xbf16>
    tpu.vector_store %arg7[%c35, %c0_1], %3 {strides = array<i32>} : memref<36x64xbf16, #tpu.memory_space<vmem>>, vector<1x64xbf16>,
    %c17 = arith.constant 17 : index
    %c0_2 = arith.constant 0 : index
    %5 = vector.load %arg7[%c17, %c0_2] : memref<36x64xbf16, #tpu.memory_space<vmem>>, vector<2x64xbf16>
    tpu.vector_store %arg7[%c17, %c0_2], %0 {strides = array<i32>} : memref<36x64xbf16, #tpu.memory_space<vmem>>, vector<2x64xbf16>,
    %cst_3 = arith.constant 0.000000e+00 : bf16
    %6 = vector.broadcast %cst_3 : bf16 to vector<2x128xbf16>
    %7 = vector.extract_strided_slice %6 {offsets = [0, 0], sizes = [1, 128], strides = [1, 1]} : vector<2x128xbf16> to vector<1x128xbf16>
    %c0_4 = arith.constant 0 : index
    %c0_5 = arith.constant 0 : index
    %8 = vector.load %arg8[%c0_4, %c0_5] : memref<36x128xbf16, #tpu.memory_space<vmem>>, vector<1x128xbf16>
    tpu.vector_store %arg8[%c0_4, %c0_5], %7 {strides = array<i32>} : memref<36x128xbf16, #tpu.memory_space<vmem>>, vector<1x128xbf16>,
    %9 = vector.extract_strided_slice %6 {offsets = [0, 0], sizes = [1, 128], strides = [1, 1]} : vector<2x128xbf16> to vector<1x128xbf16>
    %c35_6 = arith.constant 35 : index
    %c0_7 = arith.constant 0 : index
    %10 = vector.load %arg8[%c35_6, %c0_7] : memref<36x128xbf16, #tpu.memory_space<vmem>>, vector<1x128xbf16>
    tpu.vector_store %arg8[%c35_6, %c0_7], %9 {strides = array<i32>} : memref<36x128xbf16, #tpu.memory_space<vmem>>, vector<1x128xbf16>,
    %c17_8 = arith.constant 17 : index
    %c0_9 = arith.constant 0 : index
    %11 = vector.load %arg8[%c17_8, %c0_9] : memref<36x128xbf16, #tpu.memory_space<vmem>>, vector<2x128xbf16>
    tpu.vector_store %arg8[%c17_8, %c0_9], %6 {strides = array<i32>} : memref<36x128xbf16, #tpu.memory_space<vmem>>, vector<2x128xbf16>,
    %c0_10 = arith.constant 0 : index
    %c0_11 = arith.constant 0 : index
    %c0_12 = arith.constant 0 : index
    %12 = vector.load %arg1[%c0_10, %c0_11, %c0_12] : memref<2x16x64xbf16, #tpu.memory_space<vmem>>, vector<1x16x64xbf16>
    %13 = vector.shape_cast %12 : vector<1x16x64xbf16> to vector<16x64xbf16>
    %c1 = arith.constant 1 : index
    %c0_13 = arith.constant 0 : index
    %14 = vector.load %arg7[%c1, %c0_13] : memref<36x64xbf16, #tpu.memory_space<vmem>>, vector<16x64xbf16>
    tpu.vector_store %arg7[%c1, %c0_13], %13 {strides = array<i32>} : memref<36x64xbf16, #tpu.memory_space<vmem>>, vector<16x64xbf16>,
    %c1_14 = arith.constant 1 : index
    %c0_15 = arith.constant 0 : index
    %c0_16 = arith.constant 0 : index
    %15 = vector.load %arg1[%c1_14, %c0_15, %c0_16] : memref<2x16x64xbf16, #tpu.memory_space<vmem>>, vector<1x16x64xbf16>
    %16 = vector.shape_cast %15 : vector<1x16x64xbf16> to vector<16x64xbf16>
    %c19 = arith.constant 19 : index
    %c0_17 = arith.constant 0 : index
    %17 = vector.load %arg7[%c19, %c0_17] : memref<36x64xbf16, #tpu.memory_space<vmem>>, vector<16x64xbf16>
    tpu.vector_store %arg7[%c19, %c0_17], %16 {strides = array<i32>} : memref<36x64xbf16, #tpu.memory_space<vmem>>, vector<16x64xbf16>,
    %c0_18 = arith.constant 0 : index
    %c0_19 = arith.constant 0 : index
    %18 = vector.load %arg7[%c0_18, %c0_19] : memref<36x64xbf16, #tpu.memory_space<vmem>>, vector<34x64xbf16>
    %c1_20 = arith.constant 1 : index
    %c0_21 = arith.constant 0 : index
    %19 = vector.load %arg7[%c1_20, %c0_21] : memref<36x64xbf16, #tpu.memory_space<vmem>>, vector<34x64xbf16>
    %c2 = arith.constant 2 : index
    %c0_22 = arith.constant 0 : index
    %20 = vector.load %arg7[%c2, %c0_22] : memref<36x64xbf16, #tpu.memory_space<vmem>>, vector<34x64xbf16>
    %c0_23 = arith.constant 0 : index
    %c0_24 = arith.constant 0 : index
    %c0_25 = arith.constant 0 : index
    %21 = vector.load %arg2[%c0_23, %c0_24, %c0_25] : memref<3x64x128xbf16, #tpu.memory_space<vmem>>, vector<1x64x128xbf16>
    %22 = vector.shape_cast %21 : vector<1x64x128xbf16> to vector<64x128xbf16>
    %cst_26 = arith.constant dense<0.000000e+00> : vector<34x128xf32>
    %23 = tpu.matmul %18, %22, %cst_26 {dimension_numbers = #tpu.dot_dimension_numbers<[1], [0], [0], [1], [0, 0, 1, 1], [], []>} : vector<34x64xbf16>, vector<64x128xbf16>, vector<34x128xf32> -> vector<34x128xf32>
    %c1_27 = arith.constant 1 : index
    %c0_28 = arith.constant 0 : index
    %c0_29 = arith.constant 0 : index
    %24 = vector.load %arg2[%c1_27, %c0_28, %c0_29] : memref<3x64x128xbf16, #tpu.memory_space<vmem>>, vector<1x64x128xbf16>
    %25 = vector.shape_cast %24 : vector<1x64x128xbf16> to vector<64x128xbf16>
    %cst_30 = arith.constant dense<0.000000e+00> : vector<34x128xf32>
    %26 = tpu.matmul %19, %25, %cst_30 {dimension_numbers = #tpu.dot_dimension_numbers<[1], [0], [0], [1], [0, 0, 1, 1], [], []>} : vector<34x64xbf16>, vector<64x128xbf16>, vector<34x128xf32> -> vector<34x128xf32>
    %27 = arith.addf %23, %26 : vector<34x128xf32>
    %c2_31 = arith.constant 2 : index
    %c0_32 = arith.constant 0 : index
    %c0_33 = arith.constant 0 : index
    %28 = vector.load %arg2[%c2_31, %c0_32, %c0_33] : memref<3x64x128xbf16, #tpu.memory_space<vmem>>, vector<1x64x128xbf16>
    %29 = vector.shape_cast %28 : vector<1x64x128xbf16> to vector<64x128xbf16>
    %cst_34 = arith.constant dense<0.000000e+00> : vector<34x128xf32>
    %30 = tpu.matmul %20, %29, %cst_34 {dimension_numbers = #tpu.dot_dimension_numbers<[1], [0], [0], [1], [0, 0, 1, 1], [], []>} : vector<34x64xbf16>, vector<64x128xbf16>, vector<34x128xf32> -> vector<34x128xf32>
    %31 = arith.addf %27, %30 : vector<34x128xf32>
    %c0_35 = arith.constant 0 : index
    %c0_36 = arith.constant 0 : index
    %32 = vector.load %arg3[%c0_35, %c0_36] : memref<1x128xf32, #tpu.memory_space<vmem>>, vector<1x128xf32>
    %33 = vector.extract_strided_slice %31 {offsets = [0, 0], sizes = [16, 128], strides = [1, 1]} : vector<34x128xf32> to vector<16x128xf32>
    %34 = vector.broadcast %32 : vector<1x128xf32> to vector<16x128xf32>
    %35 = arith.addf %33, %34 : vector<16x128xf32>
    %cst_37 = arith.constant 0.000000e+00 : f32
    %36 = vector.broadcast %cst_37 : f32 to vector<16x128xf32>
    %37 = arith.maximumf %35, %36 : vector<16x128xf32>
    %38 = arith.truncf %37 : vector<16x128xf32> to vector<16x128xbf16>
    %c1_38 = arith.constant 1 : index
    %c0_39 = arith.constant 0 : index
    %39 = vector.load %arg8[%c1_38, %c0_39] : memref<36x128xbf16, #tpu.memory_space<vmem>>, vector<16x128xbf16>
    tpu.vector_store %arg8[%c1_38, %c0_39], %38 {strides = array<i32>} : memref<36x128xbf16, #tpu.memory_space<vmem>>, vector<16x128xbf16>,
    %40 = vector.extract_strided_slice %31 {offsets = [18, 0], sizes = [16, 128], strides = [1, 1]} : vector<34x128xf32> to vector<16x128xf32>
    %41 = vector.broadcast %32 : vector<1x128xf32> to vector<16x128xf32>
    %42 = arith.addf %40, %41 : vector<16x128xf32>
    %cst_40 = arith.constant 0.000000e+00 : f32
    %43 = vector.broadcast %cst_40 : f32 to vector<16x128xf32>
    %44 = arith.maximumf %42, %43 : vector<16x128xf32>
    %45 = arith.truncf %44 : vector<16x128xf32> to vector<16x128xbf16>
    %c19_41 = arith.constant 19 : index
    %c0_42 = arith.constant 0 : index
    %46 = vector.load %arg8[%c19_41, %c0_42] : memref<36x128xbf16, #tpu.memory_space<vmem>>, vector<16x128xbf16>
    tpu.vector_store %arg8[%c19_41, %c0_42], %45 {strides = array<i32>} : memref<36x128xbf16, #tpu.memory_space<vmem>>, vector<16x128xbf16>,
    %c0_43 = arith.constant 0 : index
    %c0_44 = arith.constant 0 : index
    %47 = vector.load %arg8[%c0_43, %c0_44] : memref<36x128xbf16, #tpu.memory_space<vmem>>, vector<34x128xbf16>
    %c1_45 = arith.constant 1 : index
    %c0_46 = arith.constant 0 : index
    %48 = vector.load %arg8[%c1_45, %c0_46] : memref<36x128xbf16, #tpu.memory_space<vmem>>, vector<34x128xbf16>
    %c2_47 = arith.constant 2 : index
    %c0_48 = arith.constant 0 : index
    %49 = vector.load %arg8[%c2_47, %c0_48] : memref<36x128xbf16, #tpu.memory_space<vmem>>, vector<34x128xbf16>
    %c0_49 = arith.constant 0 : index
    %c0_50 = arith.constant 0 : index
    %c0_51 = arith.constant 0 : index
    %50 = vector.load %arg4[%c0_49, %c0_50, %c0_51] : memref<3x128x128xbf16, #tpu.memory_space<vmem>>, vector<1x128x128xbf16>
    %51 = vector.shape_cast %50 : vector<1x128x128xbf16> to vector<128x128xbf16>
    %cst_52 = arith.constant dense<0.000000e+00> : vector<34x128xf32>
    %52 = tpu.matmul %47, %51, %cst_52 {dimension_numbers = #tpu.dot_dimension_numbers<[1], [0], [0], [1], [0, 0, 1, 1], [], []>} : vector<34x128xbf16>, vector<128x128xbf16>, vector<34x128xf32> -> vector<34x128xf32>
    %c1_53 = arith.constant 1 : index
    %c0_54 = arith.constant 0 : index
    %c0_55 = arith.constant 0 : index
    %53 = vector.load %arg4[%c1_53, %c0_54, %c0_55] : memref<3x128x128xbf16, #tpu.memory_space<vmem>>, vector<1x128x128xbf16>
    %54 = vector.shape_cast %53 : vector<1x128x128xbf16> to vector<128x128xbf16>
    %cst_56 = arith.constant dense<0.000000e+00> : vector<34x128xf32>
    %55 = tpu.matmul %48, %54, %cst_56 {dimension_numbers = #tpu.dot_dimension_numbers<[1], [0], [0], [1], [0, 0, 1, 1], [], []>} : vector<34x128xbf16>, vector<128x128xbf16>, vector<34x128xf32> -> vector<34x128xf32>
    %56 = arith.addf %52, %55 : vector<34x128xf32>
    %c2_57 = arith.constant 2 : index
    %c0_58 = arith.constant 0 : index
    %c0_59 = arith.constant 0 : index
    %57 = vector.load %arg4[%c2_57, %c0_58, %c0_59] : memref<3x128x128xbf16, #tpu.memory_space<vmem>>, vector<1x128x128xbf16>
    %58 = vector.shape_cast %57 : vector<1x128x128xbf16> to vector<128x128xbf16>
    %cst_60 = arith.constant dense<0.000000e+00> : vector<34x128xf32>
    %59 = tpu.matmul %49, %58, %cst_60 {dimension_numbers = #tpu.dot_dimension_numbers<[1], [0], [0], [1], [0, 0, 1, 1], [], []>} : vector<34x128xbf16>, vector<128x128xbf16>, vector<34x128xf32> -> vector<34x128xf32>
    %60 = arith.addf %56, %59 : vector<34x128xf32>
    %c0_61 = arith.constant 0 : index
    %c0_62 = arith.constant 0 : index
    %61 = vector.load %arg5[%c0_61, %c0_62] : memref<1x128xf32, #tpu.memory_space<vmem>>, vector<1x128xf32>
    %62 = vector.extract_strided_slice %60 {offsets = [0, 0], sizes = [16, 128], strides = [1, 1]} : vector<34x128xf32> to vector<16x128xf32>
    %63 = vector.broadcast %61 : vector<1x128xf32> to vector<16x128xf32>
    %64 = arith.addf %62, %63 : vector<16x128xf32>
    %cst_63 = arith.constant 0.000000e+00 : f32
    %65 = vector.broadcast %cst_63 : f32 to vector<16x128xf32>
    %66 = arith.maximumf %64, %65 : vector<16x128xf32>
    %c0_64 = arith.constant 0 : index
    %c0_65 = arith.constant 0 : index
    %c0_66 = arith.constant 0 : index
    %67 = vector.load %arg6[%c0_64, %c0_65, %c0_66] : memref<2x16x128xf32, #tpu.memory_space<vmem>>, vector<1x16x128xf32>
    %68 = vector.shape_cast %67 : vector<1x16x128xf32> to vector<16x128xf32>
    %69 = vector.shape_cast %66 : vector<16x128xf32> to vector<1x16x128xf32>
    tpu.vector_store %arg6[%c0_64, %c0_65, %c0_66], %69 {strides = array<i32>} : memref<2x16x128xf32, #tpu.memory_space<vmem>>, vector<1x16x128xf32>,
    %70 = vector.extract_strided_slice %60 {offsets = [18, 0], sizes = [16, 128], strides = [1, 1]} : vector<34x128xf32> to vector<16x128xf32>
    %71 = vector.broadcast %61 : vector<1x128xf32> to vector<16x128xf32>
    %72 = arith.addf %70, %71 : vector<16x128xf32>
    %cst_67 = arith.constant 0.000000e+00 : f32
    %73 = vector.broadcast %cst_67 : f32 to vector<16x128xf32>
    %74 = arith.maximumf %72, %73 : vector<16x128xf32>
    %c1_68 = arith.constant 1 : index
    %c0_69 = arith.constant 0 : index
    %c0_70 = arith.constant 0 : index
    %75 = vector.load %arg6[%c1_68, %c0_69, %c0_70] : memref<2x16x128xf32, #tpu.memory_space<vmem>>, vector<1x16x128xf32>
    %76 = vector.shape_cast %75 : vector<1x16x128xf32> to vector<16x128xf32>
    %77 = vector.shape_cast %74 : vector<16x128xf32> to vector<1x16x128xf32>
    tpu.vector_store %arg6[%c1_68, %c0_69, %c0_70], %77 {strides = array<i32>} : memref<2x16x128xf32, #tpu.memory_space<vmem>>, vector<1x16x128xf32>,
    return
  }
  func.func @transform_0(%arg0: i32) -> (i32, i32, i32) {
    %c0_i32 = arith.constant 0 : i32
    %c0_i32_0 = arith.constant 0 : i32
    %c0_i32_1 = arith.constant 0 : i32
    return %arg0, %c0_i32, %c0_i32_0 : i32, i32, i32
  }
  func.func @transform_1(%arg0: i32) -> (i32, i32, i32) {
    %c0_i32 = arith.constant 0 : i32
    %c0_i32_0 = arith.constant 0 : i32
    %c0_i32_1 = arith.constant 0 : i32
    %c0_i32_2 = arith.constant 0 : i32
    return %c0_i32, %c0_i32_0, %c0_i32_1 : i32, i32, i32
  }
  func.func @transform_2(%arg0: i32) -> (i32, i32) {
    %c0_i32 = arith.constant 0 : i32
    %c0_i32_0 = arith.constant 0 : i32
    %c0_i32_1 = arith.constant 0 : i32
    return %c0_i32, %c0_i32_0 : i32, i32
  }
  func.func @transform_3(%arg0: i32) -> (i32, i32, i32) {
    %c0_i32 = arith.constant 0 : i32
    %c0_i32_0 = arith.constant 0 : i32
    %c0_i32_1 = arith.constant 0 : i32
    %c0_i32_2 = arith.constant 0 : i32
    return %c0_i32, %c0_i32_0, %c0_i32_1 : i32, i32, i32
  }
  func.func @transform_4(%arg0: i32) -> (i32, i32) {
    %c0_i32 = arith.constant 0 : i32
    %c0_i32_0 = arith.constant 0 : i32
    %c0_i32_1 = arith.constant 0 : i32
    return %c0_i32, %c0_i32_0 : i32, i32
  }
  func.func @transform_5(%arg0: i32) -> (i32, i32, i32) {
    %c0_i32 = arith.constant 0 : i32
    %c0_i32_0 = arith.constant 0 : i32
    %c0_i32_1 = arith.constant 0 : i32
    return %arg0, %c0_i32, %c0_i32_0 : i32, i32, i32
  }
}

module attributes {stable_mosaic.version = 11 : i64} {
  func.func @kernel(%arg0: i32, %arg1: memref<2x16x64xbf16, #tpu.memory_space<vmem>>, %arg2: memref<3x64x128xbf16, #tpu.memory_space<vmem>>, %arg3: memref<1x128xf32, #tpu.memory_space<vmem>>, %arg4: memref<3x128x128xbf16, #tpu.memory_space<vmem>>, %arg5: memref<1x128xf32, #tpu.memory_space<vmem>>, %arg6: memref<2x16x128xf32, #tpu.memory_space<vmem>>, %arg7: memref<36x64xbf16, #tpu.memory_space<vmem>>, %arg8: memref<36x128xbf16, #tpu.memory_space<vmem>>) attributes {dimension_semantics = [#tpu.dimension_semantics<parallel>], iteration_bounds = array<i64: 1>, scalar_prefetch = 0 : i64, scratch_operands = 2 : i64, tpu.core_type = #tpu.core_type<tc>, window_params = [{transform_indices = @transform_0, window_bounds = array<i64: 2, 16, 64>}, {pipeline_mode = #tpu.pipeline_mode<synchronous>, transform_indices = @transform_1, window_bounds = array<i64: 3, 64, 128>}, {pipeline_mode = #tpu.pipeline_mode<synchronous>, transform_indices = @transform_2, window_bounds = array<i64: 1, 128>}, {pipeline_mode = #tpu.pipeline_mode<synchronous>, transform_indices = @transform_3, window_bounds = array<i64: 3, 128, 128>}, {pipeline_mode = #tpu.pipeline_mode<synchronous>, transform_indices = @transform_4, window_bounds = array<i64: 1, 128>}, {transform_indices = @transform_5, window_bounds = array<i64: 2, 16, 128>}]} {
    %cst = arith.constant 0.000000e+00 : bf16
    %0 = vector.broadcast %cst : bf16 to vector<2x64xbf16>
    %1 = vector.extract_strided_slice %0 {offsets = [0, 0], sizes = [1, 64], strides = [1, 1]} : vector<2x64xbf16> to vector<1x64xbf16>
    %c0 = arith.constant 0 : index
    %c0_0 = arith.constant 0 : index
    %2 = vector.load %arg7[%c0, %c0_0] : memref<36x64xbf16, #tpu.memory_space<vmem>>, vector<1x64xbf16>
    tpu.vector_store %arg7[%c0, %c0_0], %1 {strides = array<i32>} : memref<36x64xbf16, #tpu.memory_space<vmem>>, vector<1x64xbf16>,
    %3 = vector.extract_strided_slice %0 {offsets = [0, 0], sizes = [1, 64], strides = [1, 1]} : vector<2x64xbf16> to vector<1x64xbf16>
    %c35 = arith.constant 35 : index
    %c0_1 = arith.constant 0 : index
    %4 = vector.load %arg7[%c35, %c0_1] : memref<36x64xbf16, #tpu.memory_space<vmem>>, vector<1x64xbf16>
    tpu.vector_store %arg7[%c35, %c0_1], %3 {strides = array<i32>} : memref<36x64xbf16, #tpu.memory_space<vmem>>, vector<1x64xbf16>,
    %c17 = arith.constant 17 : index
    %c0_2 = arith.constant 0 : index
    %5 = vector.load %arg7[%c17, %c0_2] : memref<36x64xbf16, #tpu.memory_space<vmem>>, vector<2x64xbf16>
    tpu.vector_store %arg7[%c17, %c0_2], %0 {strides = array<i32>} : memref<36x64xbf16, #tpu.memory_space<vmem>>, vector<2x64xbf16>,
    %cst_3 = arith.constant 0.000000e+00 : bf16
    %6 = vector.broadcast %cst_3 : bf16 to vector<2x128xbf16>
    %7 = vector.extract_strided_slice %6 {offsets = [0, 0], sizes = [1, 128], strides = [1, 1]} : vector<2x128xbf16> to vector<1x128xbf16>
    %c0_4 = arith.constant 0 : index
    %c0_5 = arith.constant 0 : index
    %8 = vector.load %arg8[%c0_4, %c0_5] : memref<36x128xbf16, #tpu.memory_space<vmem>>, vector<1x128xbf16>
    tpu.vector_store %arg8[%c0_4, %c0_5], %7 {strides = array<i32>} : memref<36x128xbf16, #tpu.memory_space<vmem>>, vector<1x128xbf16>,
    %9 = vector.extract_strided_slice %6 {offsets = [0, 0], sizes = [1, 128], strides = [1, 1]} : vector<2x128xbf16> to vector<1x128xbf16>
    %c35_6 = arith.constant 35 : index
    %c0_7 = arith.constant 0 : index
    %10 = vector.load %arg8[%c35_6, %c0_7] : memref<36x128xbf16, #tpu.memory_space<vmem>>, vector<1x128xbf16>
    tpu.vector_store %arg8[%c35_6, %c0_7], %9 {strides = array<i32>} : memref<36x128xbf16, #tpu.memory_space<vmem>>, vector<1x128xbf16>,
    %c17_8 = arith.constant 17 : index
    %c0_9 = arith.constant 0 : index
    %11 = vector.load %arg8[%c17_8, %c0_9] : memref<36x128xbf16, #tpu.memory_space<vmem>>, vector<2x128xbf16>
    tpu.vector_store %arg8[%c17_8, %c0_9], %6 {strides = array<i32>} : memref<36x128xbf16, #tpu.memory_space<vmem>>, vector<2x128xbf16>,
    %c0_10 = arith.constant 0 : index
    %c0_11 = arith.constant 0 : index
    %c0_12 = arith.constant 0 : index
    %12 = vector.load %arg1[%c0_10, %c0_11, %c0_12] : memref<2x16x64xbf16, #tpu.memory_space<vmem>>, vector<1x16x64xbf16>
    %13 = vector.shape_cast %12 : vector<1x16x64xbf16> to vector<16x64xbf16>
    %c1 = arith.constant 1 : index
    %c0_13 = arith.constant 0 : index
    %14 = vector.load %arg7[%c1, %c0_13] : memref<36x64xbf16, #tpu.memory_space<vmem>>, vector<16x64xbf16>
    tpu.vector_store %arg7[%c1, %c0_13], %13 {strides = array<i32>} : memref<36x64xbf16, #tpu.memory_space<vmem>>, vector<16x64xbf16>,
    %c1_14 = arith.constant 1 : index
    %c0_15 = arith.constant 0 : index
    %c0_16 = arith.constant 0 : index
    %15 = vector.load %arg1[%c1_14, %c0_15, %c0_16] : memref<2x16x64xbf16, #tpu.memory_space<vmem>>, vector<1x16x64xbf16>
    %16 = vector.shape_cast %15 : vector<1x16x64xbf16> to vector<16x64xbf16>
    %c19 = arith.constant 19 : index
    %c0_17 = arith.constant 0 : index
    %17 = vector.load %arg7[%c19, %c0_17] : memref<36x64xbf16, #tpu.memory_space<vmem>>, vector<16x64xbf16>
    tpu.vector_store %arg7[%c19, %c0_17], %16 {strides = array<i32>} : memref<36x64xbf16, #tpu.memory_space<vmem>>, vector<16x64xbf16>,
    %c0_18 = arith.constant 0 : index
    %c0_19 = arith.constant 0 : index
    %18 = vector.load %arg7[%c0_18, %c0_19] : memref<36x64xbf16, #tpu.memory_space<vmem>>, vector<34x64xbf16>
    %c1_20 = arith.constant 1 : index
    %c0_21 = arith.constant 0 : index
    %19 = vector.load %arg7[%c1_20, %c0_21] : memref<36x64xbf16, #tpu.memory_space<vmem>>, vector<34x64xbf16>
    %c2 = arith.constant 2 : index
    %c0_22 = arith.constant 0 : index
    %20 = vector.load %arg7[%c2, %c0_22] : memref<36x64xbf16, #tpu.memory_space<vmem>>, vector<34x64xbf16>
    %c0_23 = arith.constant 0 : index
    %c0_24 = arith.constant 0 : index
    %c0_25 = arith.constant 0 : index
    %21 = vector.load %arg2[%c0_23, %c0_24, %c0_25] : memref<3x64x128xbf16, #tpu.memory_space<vmem>>, vector<1x64x128xbf16>
    %22 = vector.shape_cast %21 : vector<1x64x128xbf16> to vector<64x128xbf16>
    %cst_26 = arith.constant dense<0.000000e+00> : vector<34x128xf32>
    %23 = tpu.matmul %18, %22, %cst_26 {dimension_numbers = #tpu.dot_dimension_numbers<[1], [0], [0], [1], [0, 0, 1, 1], [], []>} : vector<34x64xbf16>, vector<64x128xbf16>, vector<34x128xf32> -> vector<34x128xf32>
    %c1_27 = arith.constant 1 : index
    %c0_28 = arith.constant 0 : index
    %c0_29 = arith.constant 0 : index
    %24 = vector.load %arg2[%c1_27, %c0_28, %c0_29] : memref<3x64x128xbf16, #tpu.memory_space<vmem>>, vector<1x64x128xbf16>
    %25 = vector.shape_cast %24 : vector<1x64x128xbf16> to vector<64x128xbf16>
    %cst_30 = arith.constant dense<0.000000e+00> : vector<34x128xf32>
    %26 = tpu.matmul %19, %25, %cst_30 {dimension_numbers = #tpu.dot_dimension_numbers<[1], [0], [0], [1], [0, 0, 1, 1], [], []>} : vector<34x64xbf16>, vector<64x128xbf16>, vector<34x128xf32> -> vector<34x128xf32>
    %27 = arith.addf %23, %26 : vector<34x128xf32>
    %c2_31 = arith.constant 2 : index
    %c0_32 = arith.constant 0 : index
    %c0_33 = arith.constant 0 : index
    %28 = vector.load %arg2[%c2_31, %c0_32, %c0_33] : memref<3x64x128xbf16, #tpu.memory_space<vmem>>, vector<1x64x128xbf16>
    %29 = vector.shape_cast %28 : vector<1x64x128xbf16> to vector<64x128xbf16>
    %cst_34 = arith.constant dense<0.000000e+00> : vector<34x128xf32>
    %30 = tpu.matmul %20, %29, %cst_34 {dimension_numbers = #tpu.dot_dimension_numbers<[1], [0], [0], [1], [0, 0, 1, 1], [], []>} : vector<34x64xbf16>, vector<64x128xbf16>, vector<34x128xf32> -> vector<34x128xf32>
    %31 = arith.addf %27, %30 : vector<34x128xf32>
    %c0_35 = arith.constant 0 : index
    %c0_36 = arith.constant 0 : index
    %32 = vector.load %arg3[%c0_35, %c0_36] : memref<1x128xf32, #tpu.memory_space<vmem>>, vector<1x128xf32>
    %33 = vector.extract_strided_slice %31 {offsets = [0, 0], sizes = [16, 128], strides = [1, 1]} : vector<34x128xf32> to vector<16x128xf32>
    %34 = vector.broadcast %32 : vector<1x128xf32> to vector<16x128xf32>
    %35 = arith.addf %33, %34 : vector<16x128xf32>
    %cst_37 = arith.constant 0.000000e+00 : f32
    %36 = vector.broadcast %cst_37 : f32 to vector<16x128xf32>
    %37 = arith.maximumf %35, %36 : vector<16x128xf32>
    %38 = arith.truncf %37 : vector<16x128xf32> to vector<16x128xbf16>
    %c1_38 = arith.constant 1 : index
    %c0_39 = arith.constant 0 : index
    %39 = vector.load %arg8[%c1_38, %c0_39] : memref<36x128xbf16, #tpu.memory_space<vmem>>, vector<16x128xbf16>
    tpu.vector_store %arg8[%c1_38, %c0_39], %38 {strides = array<i32>} : memref<36x128xbf16, #tpu.memory_space<vmem>>, vector<16x128xbf16>,
    %40 = vector.extract_strided_slice %31 {offsets = [18, 0], sizes = [16, 128], strides = [1, 1]} : vector<34x128xf32> to vector<16x128xf32>
    %41 = vector.broadcast %32 : vector<1x128xf32> to vector<16x128xf32>
    %42 = arith.addf %40, %41 : vector<16x128xf32>
    %cst_40 = arith.constant 0.000000e+00 : f32
    %43 = vector.broadcast %cst_40 : f32 to vector<16x128xf32>
    %44 = arith.maximumf %42, %43 : vector<16x128xf32>
    %45 = arith.truncf %44 : vector<16x128xf32> to vector<16x128xbf16>
    %c19_41 = arith.constant 19 : index
    %c0_42 = arith.constant 0 : index
    %46 = vector.load %arg8[%c19_41, %c0_42] : memref<36x128xbf16, #tpu.memory_space<vmem>>, vector<16x128xbf16>
    tpu.vector_store %arg8[%c19_41, %c0_42], %45 {strides = array<i32>} : memref<36x128xbf16, #tpu.memory_space<vmem>>, vector<16x128xbf16>,
    %c0_43 = arith.constant 0 : index
    %c0_44 = arith.constant 0 : index
    %47 = vector.load %arg8[%c0_43, %c0_44] : memref<36x128xbf16, #tpu.memory_space<vmem>>, vector<34x128xbf16>
    %c1_45 = arith.constant 1 : index
    %c0_46 = arith.constant 0 : index
    %48 = vector.load %arg8[%c1_45, %c0_46] : memref<36x128xbf16, #tpu.memory_space<vmem>>, vector<34x128xbf16>
    %c2_47 = arith.constant 2 : index
    %c0_48 = arith.constant 0 : index
    %49 = vector.load %arg8[%c2_47, %c0_48] : memref<36x128xbf16, #tpu.memory_space<vmem>>, vector<34x128xbf16>
    %c0_49 = arith.constant 0 : index
    %c0_50 = arith.constant 0 : index
    %c0_51 = arith.constant 0 : index
    %50 = vector.load %arg4[%c0_49, %c0_50, %c0_51] : memref<3x128x128xbf16, #tpu.memory_space<vmem>>, vector<1x128x128xbf16>
    %51 = vector.shape_cast %50 : vector<1x128x128xbf16> to vector<128x128xbf16>
    %cst_52 = arith.constant dense<0.000000e+00> : vector<34x128xf32>
    %52 = tpu.matmul %47, %51, %cst_52 {dimension_numbers = #tpu.dot_dimension_numbers<[1], [0], [0], [1], [0, 0, 1, 1], [], []>} : vector<34x128xbf16>, vector<128x128xbf16>, vector<34x128xf32> -> vector<34x128xf32>
    %c1_53 = arith.constant 1 : index
    %c0_54 = arith.constant 0 : index
    %c0_55 = arith.constant 0 : index
    %53 = vector.load %arg4[%c1_53, %c0_54, %c0_55] : memref<3x128x128xbf16, #tpu.memory_space<vmem>>, vector<1x128x128xbf16>
    %54 = vector.shape_cast %53 : vector<1x128x128xbf16> to vector<128x128xbf16>
    %cst_56 = arith.constant dense<0.000000e+00> : vector<34x128xf32>
    %55 = tpu.matmul %48, %54, %cst_56 {dimension_numbers = #tpu.dot_dimension_numbers<[1], [0], [0], [1], [0, 0, 1, 1], [], []>} : vector<34x128xbf16>, vector<128x128xbf16>, vector<34x128xf32> -> vector<34x128xf32>
    %56 = arith.addf %52, %55 : vector<34x128xf32>
    %c2_57 = arith.constant 2 : index
    %c0_58 = arith.constant 0 : index
    %c0_59 = arith.constant 0 : index
    %57 = vector.load %arg4[%c2_57, %c0_58, %c0_59] : memref<3x128x128xbf16, #tpu.memory_space<vmem>>, vector<1x128x128xbf16>
    %58 = vector.shape_cast %57 : vector<1x128x128xbf16> to vector<128x128xbf16>
    %cst_60 = arith.constant dense<0.000000e+00> : vector<34x128xf32>
    %59 = tpu.matmul %49, %58, %cst_60 {dimension_numbers = #tpu.dot_dimension_numbers<[1], [0], [0], [1], [0, 0, 1, 1], [], []>} : vector<34x128xbf16>, vector<128x128xbf16>, vector<34x128xf32> -> vector<34x128xf32>
    %60 = arith.addf %56, %59 : vector<34x128xf32>
    %c0_61 = arith.constant 0 : index
    %c0_62 = arith.constant 0 : index
    %61 = vector.load %arg5[%c0_61, %c0_62] : memref<1x128xf32, #tpu.memory_space<vmem>>, vector<1x128xf32>
    %62 = vector.extract_strided_slice %60 {offsets = [0, 0], sizes = [16, 128], strides = [1, 1]} : vector<34x128xf32> to vector<16x128xf32>
    %63 = vector.broadcast %61 : vector<1x128xf32> to vector<16x128xf32>
    %64 = arith.addf %62, %63 : vector<16x128xf32>
    %cst_63 = arith.constant 0.000000e+00 : f32
    %65 = vector.broadcast %cst_63 : f32 to vector<16x128xf32>
    %66 = arith.maximumf %64, %65 : vector<16x128xf32>
    %c0_64 = arith.constant 0 : index
    %c0_65 = arith.constant 0 : index
    %c0_66 = arith.constant 0 : index
    %67 = vector.load %arg6[%c0_64, %c0_65, %c0_66] : memref<2x16x128xf32, #tpu.memory_space<vmem>>, vector<1x16x128xf32>
    %68 = vector.shape_cast %67 : vector<1x16x128xf32> to vector<16x128xf32>
    %69 = vector.shape_cast %66 : vector<16x128xf32> to vector<1x16x128xf32>
    tpu.vector_store %arg6[%c0_64, %c0_65, %c0_66], %69 {strides = array<i32>} : memref<2x16x128xf32, #tpu.memory_space<vmem>>, vector<1x16x128xf32>,
    %70 = vector.extract_strided_slice %60 {offsets = [18, 0], sizes = [16, 128], strides = [1, 1]} : vector<34x128xf32> to vector<16x128xf32>
    %71 = vector.broadcast %61 : vector<1x128xf32> to vector<16x128xf32>
    %72 = arith.addf %70, %71 : vector<16x128xf32>
    %cst_67 = arith.constant 0.000000e+00 : f32
    %73 = vector.broadcast %cst_67 : f32 to vector<16x128xf32>
    %74 = arith.maximumf %72, %73 : vector<16x128xf32>
    %c1_68 = arith.constant 1 : index
    %c0_69 = arith.constant 0 : index
    %c0_70 = arith.constant 0 : index
    %75 = vector.load %arg6[%c1_68, %c0_69, %c0_70] : memref<2x16x128xf32, #tpu.memory_space<vmem>>, vector<1x16x128xf32>
    %76 = vector.shape_cast %75 : vector<1x16x128xf32> to vector<16x128xf32>
    %77 = vector.shape_cast %74 : vector<16x128xf32> to vector<1x16x128xf32>
    tpu.vector_store %arg6[%c1_68, %c0_69, %c0_70], %77 {strides = array<i32>} : memref<2x16x128xf32, #tpu.memory_space<vmem>>, vector<1x16x128xf32>,
    return
  }
  func.func @transform_0(%arg0: i32) -> (i32, i32, i32) {
    %c0_i32 = arith.constant 0 : i32
    %c0_i32_0 = arith.constant 0 : i32
    %c0_i32_1 = arith.constant 0 : i32
    return %arg0, %c0_i32, %c0_i32_0 : i32, i32, i32
  }
  func.func @transform_1(%arg0: i32) -> (i32, i32, i32) {
    %c0_i32 = arith.constant 0 : i32
    %c0_i32_0 = arith.constant 0 : i32
    %c0_i32_1 = arith.constant 0 : i32
    %c0_i32_2 = arith.constant 0 : i32
    return %c0_i32, %c0_i32_0, %c0_i32_1 : i32, i32, i32
  }
  func.func @transform_2(%arg0: i32) -> (i32, i32) {
    %c0_i32 = arith.constant 0 : i32
    %c0_i32_0 = arith.constant 0 : i32
    %c0_i32_1 = arith.constant 0 : i32
    return %c0_i32, %c0_i32_0 : i32, i32
  }
  func.func @transform_3(%arg0: i32) -> (i32, i32, i32) {
    %c0_i32 = arith.constant 0 : i32
    %c0_i32_0 = arith.constant 0 : i32
    %c0_i32_1 = arith.constant 0 : i32
    %c0_i32_2 = arith.constant 0 : i32
    return %c0_i32, %c0_i32_0, %c0_i32_1 : i32, i32, i32
  }
  func.func @transform_4(%arg0: i32) -> (i32, i32) {
    %c0_i32 = arith.constant 0 : i32
    %c0_i32_0 = arith.constant 0 : i32
    %c0_i32_1 = arith.constant 0 : i32
    return %c0_i32, %c0_i32_0 : i32, i32
  }
  func.func @transform_5(%arg0: i32) -> (i32, i32, i32) {
    %c0_i32 = arith.constant 0 : i32
    %c0_i32_0 = arith.constant 0 : i32
    %c0_i32_1 = arith.constant 0 : i32
    return %arg0, %c0_i32, %c0_i32_0 : i32, i32, i32
  }
}

</mosaic_0001>

<llo_original>
// kernel: tpu_custom_call.1
$region0: #{tpu_custom_call.1}
  #allocation0 [shape = 'u32[]', space=smem, size = 0x4, offset = 0x4, fixed_abs, tag = 'smem constant byte address 0x4 - core index']
  #allocation1 [shape = 'u32[72,128]{1,0:T(1,128)}', space=vmem, size = 0x9000, scoped, tag = 'internal scratch']
  #allocation2 [shape = 'bf16[36,64]{1,0:T(8,128)(2,1)}', space=vmem, size = 0x2800, scoped, tag = 'scratch operand']
  #allocation3 [shape = 'bf16[36,128]{1,0:T(8,128)(2,1)}', space=vmem, size = 0x2800, scoped, tag = 'scratch operand']
  %s0 = inlined_call_operand.hbm [shape: bf16[2,16,64], index: 0, kind: input, shape index: {}]
  %s1 = inlined_call_operand.hbm [shape: bf16[3,64,128], index: 1, kind: input, shape index: {}]
  %s2 = inlined_call_operand.vmem [shape: f32[1,128], index: 2, kind: input, shape index: {}]
  %s3 = inlined_call_operand.hbm [shape: bf16[3,128,128], index: 3, kind: input, shape index: {}]
  %s4 = inlined_call_operand.vmem [shape: f32[1,128], index: 4, kind: input, shape index: {}]
  %s5 = inlined_call_operand.hbm [shape: f32[2,16,128], index: 5, kind: output, shape index: {}]
  %s6 = sld [smem:[#allocation0]]
  $region42: #{tpu_custom_call.1} parent=0
    _
  %s8 = ssub.s32 1, %s6
  %s9 = scalar_select 0, %s8, %s6
  $region1: #{tpu_custom_call.1} parent=0
    #allocation4 [shape = 'u8[8192]{0}', space=vmem, size = 0x2000, scoped, tag = 'input window, operand 0, single buffered']
    #allocation5 [shape = 's32[1]{0}', space=sflag, size = 0x4, scoped, tag = 'scoped memory for tpu_custom_call.1']
    #allocation6 [shape = 's32[1]{0}', space=sflag, size = 0x4, scoped, tag = 'scoped memory for tpu_custom_call.1']
    #allocation7 [shape = 'u8[49152]{0}', space=vmem, size = 0xc000, scoped, tag = 'input window, operand 1, single buffered']
    #allocation8 [shape = 's32[1]{0}', space=sflag, size = 0x4, scoped, tag = 'scoped memory for tpu_custom_call.1']
    #allocation9 [shape = 'u8[98304]{0}', space=vmem, size = 0x18000, scoped, tag = 'input window, operand 3, single buffered']
    #allocation10 [shape = 'u8[16384]{0}', space=vmem, size = 0x4000, scoped, tag = 'output window, operand 0, single buffered']
    %10 = vsyncpa [#allocation5], 0
    %11 = vsyncpa [#allocation8], 0
    %12 = vsyncpa [#allocation6], 0
    // Predicated region
    $region2: #{tpu_custom_call.1} parent=1 // pred_check
      _
    $region3: #{tpu_custom_call.1} parent=1 // pred_check_branch
      %14 = sbr.rel (0) target = $region5
    $region4: #{tpu_custom_call.1} parent=1 // pred_region
      %16 = vsyncadd [#allocation5], 0
      %s17 = sshll.u32 %s0, 4
      %s18 = int_to_ptr.hbm [resolvable:$true] %s17
      %s19 = sshll.u32 [#allocation4], 4
      %s20 = int_to_ptr.vmem [resolvable:$true] %s19
      %25 = dma.hbm_to_vmem [thread:$0]  %s18, 256, %s20, [#allocation5], 64, 64, 4
    $region5: #{tpu_custom_call.1} parent=1 // pred_fallthru
      _
    // Predicated region
    $region6: #{tpu_custom_call.1} parent=1 // pred_check
      _
    $region7: #{tpu_custom_call.1} parent=1 // pred_check_branch
      %27 = sbr.rel (0) target = $region9
    $region8: #{tpu_custom_call.1} parent=1 // pred_region
      %29 = vsyncadd [#allocation8], 0
      %s30 = sshll.u32 %s1, 4
      %s31 = int_to_ptr.hbm [resolvable:$true] %s30
      %s32 = sshll.u32 [#allocation7], 4
      %s33 = int_to_ptr.vmem [resolvable:$true] %s32
      %38 = dma.hbm_to_vmem [thread:$0]  %s31, 1536, %s33, [#allocation8], 64, 64, 4
    $region9: #{tpu_custom_call.1} parent=1 // pred_fallthru
      _
    // Predicated region
    $region10: #{tpu_custom_call.1} parent=1 // pred_check
      _
    $region11: #{tpu_custom_call.1} parent=1 // pred_check_branch
      %40 = sbr.rel (0) target = $region13
    $region12: #{tpu_custom_call.1} parent=1 // pred_region
      _
    $region13: #{tpu_custom_call.1} parent=1 // pred_fallthru
      _
    // Predicated region
    $region14: #{tpu_custom_call.1} parent=1 // pred_check
      _
    $region15: #{tpu_custom_call.1} parent=1 // pred_check_branch
      %42 = sbr.rel (0) target = $region17
    $region16: #{tpu_custom_call.1} parent=1 // pred_region
      %44 = vsyncadd [#allocation8], 0
      %s45 = sshll.u32 %s3, 4
      %s46 = int_to_ptr.hbm [resolvable:$true] %s45
      %s47 = sshll.u32 [#allocation9], 4
      %s48 = int_to_ptr.vmem [resolvable:$true] %s47
      %53 = dma.hbm_to_vmem [thread:$0]  %s46, 3072, %s48, [#allocation8], 64, 64, 4
    $region17: #{tpu_custom_call.1} parent=1 // pred_fallthru
      _
    // Predicated region
    $region18: #{tpu_custom_call.1} parent=1 // pred_check
      _
    $region19: #{tpu_custom_call.1} parent=1 // pred_check_branch
      %55 = sbr.rel (0) target = $region21
    $region20: #{tpu_custom_call.1} parent=1 // pred_region
      _
    $region21: #{tpu_custom_call.1} parent=1 // pred_fallthru
      _
    // Predicated region
    $region22: #{tpu_custom_call.1} parent=1 // pred_check
      _
    $region23: #{tpu_custom_call.1} parent=1 // pred_check_branch
      %57 = sbr.rel (0) target = $region25
    $region24: #{tpu_custom_call.1} parent=1 // pred_region
      %59 = dma.done [#allocation5], 256
    $region25: #{tpu_custom_call.1} parent=1 // pred_fallthru
      _
    // Predicated region
    $region26: #{tpu_custom_call.1} parent=1 // pred_check
      _
    $region27: #{tpu_custom_call.1} parent=1 // pred_check_branch
      %61 = sbr.rel (0) target = $region29
    $region28: #{tpu_custom_call.1} parent=1 // pred_region
      %63 = dma.done [#allocation8], 1536
    $region29: #{tpu_custom_call.1} parent=1 // pred_fallthru
      _
    // Predicated region
    $region30: #{tpu_custom_call.1} parent=1 // pred_check
      _
    $region31: #{tpu_custom_call.1} parent=1 // pred_check_branch
      %65 = sbr.rel (0) target = $region33
    $region32: #{tpu_custom_call.1} parent=1 // pred_region
      %67 = dma.done [#allocation8], 3072
    $region33: #{tpu_custom_call.1} parent=1 // pred_fallthru
      _
    %vm69 = vcmask 516096
    %vm70 = vsmask.f32 256
    %vm71 = vmand %vm69, %vm70
    %v72 = vld [vmem:[#allocation2] sm:$0x1]
    %v73 = vsel %vm71, 0, %v72
    %74 = vst [vmem:[#allocation2] sm:$0x1] %v73
    %vm75 = vcmask 517121
    %vm76 = vsmask.f32 7942
    %vm77 = vmand %vm75, %vm76
    %v78 = vld [vmem:[#allocation2 + $0x10] sm:$0x2]
    %v79 = vsel %vm77, 0, %v78
    %80 = vst [vmem:[#allocation2 + $0x10] sm:$0x2] %v79
    %vm81 = vcmask 517120
    %vm82 = vsmask.f32 1282
    %vm83 = vmand %vm81, %vm82
    %v84 = vld [vmem:[#allocation2 + $0x8] sm:$0x3]
    %v85 = vsel %vm83, 0, %v84
    %86 = vst [vmem:[#allocation2 + $0x8] sm:$0x3] %v85
    %vm87 = vcmask 1040384
    %vm88 = vmand %vm87, %vm70
    %v89 = vld [vmem:[#allocation3] sm:$0x1]
    %v90 = vsel %vm88, 0, %v89
    %91 = vst [vmem:[#allocation3] sm:$0x1] %v90
    %vm92 = vcmask 1041409
    %vm93 = vmand %vm92, %vm76
    %v94 = vld [vmem:[#allocation3 + $0x10] sm:$0x2]
    %v95 = vsel %vm93, 0, %v94
    %96 = vst [vmem:[#allocation3 + $0x10] sm:$0x2] %v95
    %vm97 = vcmask 1041408
    %vm98 = vmand %vm97, %vm82
    %v99 = vld [vmem:[#allocation3 + $0x8] sm:$0x3]
    %v100 = vsel %vm98, 0, %v99
    %101 = vst [vmem:[#allocation3 + $0x8] sm:$0x3] %v100
    %v102 = vld [vmem:[#allocation4] sm:$0xf]
    %v103 = vld [vmem:[#allocation4 + $0x4] sm:$0xf]
    %vm104 = vsmask.f32 4368
    %vm105 = vmor %vm70, %vm104
    %v107 = vshrl.u32 %v102, 16
    %v109 = vrot.slane %v107, 7
    %v110 = vshll.u32 %v102, 16
    %v112 = vor.u32 %v109, %v110
    %v113 = vrot.slane %v109, 4
    %v115 = vshrl.u32 %v103, 16
    %v117 = vrot.slane %v115, 7
    %v118 = vshll.u32 %v103, 16
    %v120 = vor.u32 %v117, %v118
    %v121 = vsel %vm105, %v113, %v120
    %v122 = vrot.slane %v117, 4
    %vm126 = vcmask 519168
    %vm127 = vsmask.f32 7938
    %vm128 = vmand %vm126, %vm127
    %v129 = vld [vmem:[#allocation2] sm:$0xf]
    %v130 = vsel %vm128, %v112, %v129
    %131 = vst [vmem:[#allocation2] sm:$0xf] %v130
    %vm132 = vcmask 519168
    %133 = vst.msk [vmem:[#allocation2 + $0x4] sm:$0xf] %vm132, %v121
    %v134 = vld [vmem:[#allocation2 + $0x8] sm:$0x1]
    %v135 = vsel %vm71, %v122, %v134
    %136 = vst [vmem:[#allocation2 + $0x8] sm:$0x1] %v135
    %s137 = scalar_lea.vmem [#allocation4], 8
    %v138 = vld [vmem:[%s137] sm:$0xf]
    %v139 = vld [vmem:[%s137 + $0x4] sm:$0xf]
    %vm140 = vsmask.f32 1280
    %vm141 = vsmask.f32 5392
    %vm142 = vmor %vm140, %vm141
    %v144 = vshrl.u32 %v138, 16
    %v146 = vrot.slane %v144, 6
    %v147 = vshll.u32 %v138, 16
    %v149 = vrot.slane %v147, 7
    %v150 = vor.u32 %v146, %v149
    %v151 = vrot.slane %v150, 4
    %v153 = vshrl.u32 %v139, 16
    %v155 = vrot.slane %v153, 6
    %v156 = vshll.u32 %v139, 16
    %v158 = vrot.slane %v156, 7
    %v159 = vor.u32 %v155, %v158
    %v160 = vsel %vm142, %v151, %v159
    %v161 = vrot.slane %v159, 4
    %vm165 = vcmask 519169
    %vm166 = vmand %vm165, %vm76
    %v167 = vld [vmem:[#allocation2 + $0x8] sm:$0xe]
    %v168 = vsel %vm166, %v150, %v167
    %169 = vst [vmem:[#allocation2 + $0x8] sm:$0xe] %v168
    %170 = vst.msk [vmem:[#allocation2 + $0xc] sm:$0xf] %vm132, %v160
    %vm171 = vmand %vm81, %vm140
    %v172 = vld [vmem:[#allocation2 + $0x10] sm:$0x3]
    %v173 = vsel %vm171, %v161, %v172
    %174 = vst [vmem:[#allocation2 + $0x10] sm:$0x3] %v173
    %v175 = vld [vmem:[#allocation2] sm:$0xf]
    %v176 = vld [vmem:[#allocation2 + $0x4] sm:$0xf]
    %v177 = vld [vmem:[#allocation2 + $0x8] sm:$0xf]
    %v178 = vld [vmem:[#allocation2 + $0xc] sm:$0xf]
    %v179 = vld [vmem:[#allocation2 + $0x10] sm:$0x1]
    %v180 = vld [vmem:[#allocation2 + $0x10] sm:$0x3]
    %v181 = vld [vmem:[#allocation2] sm:$0xe]
    %v182 = vld [vmem:[#allocation7] sm:$0xf]
    %v183 = vld [vmem:[#allocation7 + $0x4] sm:$0xf]
    %v184 = vld [vmem:[#allocation7 + $0x8] sm:$0xf]
    %v185 = vld [vmem:[#allocation7 + $0xc] sm:$0xf]
    %v186 = vld [vmem:[#allocation7 + $0x10] sm:$0xf]
    %v187 = vld [vmem:[#allocation7 + $0x14] sm:$0xf]
    %v188 = vld [vmem:[#allocation7 + $0x18] sm:$0xf]
    %v189 = vld [vmem:[#allocation7 + $0x1c] sm:$0xf]
    %s190 = scalar_lea.vmem [#allocation7], 32
    %v191 = vld [vmem:[%s190] sm:$0xf]
    %v192 = vld [vmem:[%s190 + $0x4] sm:$0xf]
    %v193 = vld [vmem:[%s190 + $0x8] sm:$0xf]
    %v194 = vld [vmem:[%s190 + $0xc] sm:$0xf]
    %v195 = vld [vmem:[%s190 + $0x10] sm:$0xf]
    %v196 = vld [vmem:[%s190 + $0x14] sm:$0xf]
    %v197 = vld [vmem:[%s190 + $0x18] sm:$0xf]
    %v198 = vld [vmem:[%s190 + $0x1c] sm:$0xf]
    %v204 = vunpack.c.l.b16 %v175
    %v205 = vunpack.c.l.b16 %v176
    %v206 = vunpack.c.l.b16 %v177
    %v207 = vunpack.c.l.b16 %v178
    %v208 = vunpack.c.l.b16 %v180
    %v209 = vpack.c.b16 %v205, %v204
    %v210 = vpack.c.b16 %v207, %v206
    %v211 = vpack.c.b16 %v208, %v208
    %vm212 = vsmask.f32 7424
    %v214 = vshrl.u32 %v209, 16
    %v216 = vshll.u32 %v209, 16
    %v218 = vrot.slane %v216, 1
    %v219 = vor.u32 %v214, %v218
    %v221 = vshll.u32 %v210, 16
    %v223 = vrot.slane %v221, 1
    %v224 = vsel %vm212, %v219, %v223
    %v225 = vshrl.u32 %v210, 16
    %v227 = vor.u32 %v225, %v223
    %v229 = vshll.u32 %v211, 16
    %v231 = vrot.slane %v229, 1
    %v232 = vsel %vm212, %v227, %v231
    %v233 = vshrl.u32 %v211, 16
    %v235 = vor.u32 %v233, %v231
    %v244 = vunpack.c.l.b16 %v191
    %v245 = vunpack.c.l.b16 %v192
    %v246 = vunpack.c.l.b16 %v193
    %v247 = vunpack.c.l.b16 %v194
    %v248 = vunpack.c.l.b16 %v195
    %v249 = vunpack.c.l.b16 %v196
    %v250 = vunpack.c.l.b16 %v197
    %v251 = vunpack.c.l.b16 %v198
    %v252 = vpack.c.b16 %v245, %v244
    %v253 = vpack.c.b16 %v247, %v246
    %v254 = vpack.c.b16 %v249, %v248
    %v255 = vpack.c.b16 %v251, %v250
    %vm260 = vcmask 523264
    %v262 = vsel %vm260, %v224, 0
    %v265 = vsel %vm260, %v232, 0
    %v268 = vsel %vm260, %v235, 0
    %270 = vmatpush.bf16.msra.mxu0 0
    %271 = vmatpush.bf16.msra.mxu0 0
    %272 = vmatpush.bf16.msra.mxu0 0
    %273 = vmatpush.bf16.msra.mxu0 0
    %274 = vmatpush.bf16.msra.mxu0 %v255
    %275 = vmatpush.bf16.msra.mxu0 %v254
    %276 = vmatpush.bf16.msra.mxu0 %v253
    %277 = vmatpush.bf16.msra.mxu0 %v252
    %278 = vmatmul.bf16.gmra.mxu0 %v262
    %v279 = vpop.f32.mrf.mxu0
    %v280 = vadd.f32 0.0, %v279
    %v281 = vpop.f32.mrf.mxu0
    %v282 = vadd.f32 0.0, %v281
    %283 = vmatmul.bf16.gmra.mxu0 %v265
    %v284 = vpop.f32.mrf.mxu0
    %v285 = vadd.f32 0.0, %v284
    %v286 = vpop.f32.mrf.mxu0
    %v287 = vadd.f32 0.0, %v286
    %288 = vmatmul.bf16.gmra.mxu0 %v268
    %v289 = vpop.f32.mrf.mxu0
    %v290 = vadd.f32 0.0, %v289
    %v291 = vpop.f32.mrf.mxu0
    %292 = vdwg.mxu0
    %v294 = vunpack.c.l.b16 %v179
    %v295 = vpack.c.b16 %v294, %v294
    %v304 = vunpack.c.l.b16 %v182
    %v305 = vunpack.c.l.b16 %v183
    %v306 = vunpack.c.l.b16 %v184
    %v307 = vunpack.c.l.b16 %v185
    %v308 = vunpack.c.l.b16 %v186
    %v309 = vunpack.c.l.b16 %v187
    %v310 = vunpack.c.l.b16 %v188
    %v311 = vunpack.c.l.b16 %v189
    %v312 = vpack.c.b16 %v305, %v304
    %v313 = vpack.c.b16 %v307, %v306
    %v314 = vpack.c.b16 %v309, %v308
    %v315 = vpack.c.b16 %v311, %v310
    %v320 = vsel %vm260, %v209, 0
    %v322 = vsel %vm260, %v210, 0
    %v325 = vsel %vm260, %v295, 0
    %327 = vmatpush.bf16.msra.mxu0 0
    %328 = vmatpush.bf16.msra.mxu0 0
    %329 = vmatpush.bf16.msra.mxu0 0
    %330 = vmatpush.bf16.msra.mxu0 0
    %331 = vmatpush.bf16.msra.mxu0 %v315
    %332 = vmatpush.bf16.msra.mxu0 %v314
    %333 = vmatpush.bf16.msra.mxu0 %v313
    %334 = vmatpush.bf16.msra.mxu0 %v312
    %335 = vmatmul.bf16.gmra.mxu0 %v320
    %v336 = vpop.f32.mrf.mxu0
    %v337 = vadd.f32 %v280, %v336
    %v338 = vpop.f32.mrf.mxu0
    %v339 = vadd.f32 %v282, %v338
    %340 = vmatmul.bf16.gmra.mxu0 %v322
    %v341 = vpop.f32.mrf.mxu0
    %v342 = vadd.f32 %v285, %v341
    %v343 = vpop.f32.mrf.mxu0
    %v344 = vadd.f32 %v287, %v343
    %345 = vmatmul.bf16.gmra.mxu0 %v325
    %v346 = vpop.f32.mrf.mxu0
    %v347 = vadd.f32 %v290, %v346
    %v348 = vpop.f32.mrf.mxu0
    %349 = vdwg.mxu0
    %s350 = scalar_lea.vmem [#allocation7], 64
    %v351 = vld [vmem:[%s350] sm:$0xf]
    %v352 = vld [vmem:[%s350 + $0x4] sm:$0xf]
    %v353 = vld [vmem:[%s350 + $0x8] sm:$0xf]
    %v354 = vld [vmem:[%s350 + $0xc] sm:$0xf]
    %v355 = vld [vmem:[%s350 + $0x10] sm:$0xf]
    %v356 = vld [vmem:[%s350 + $0x14] sm:$0xf]
    %v357 = vld [vmem:[%s350 + $0x18] sm:$0xf]
    %v358 = vld [vmem:[%s350 + $0x1c] sm:$0xf]
    %v360 = vunpack.c.l.b16 %v181
    %v361 = vpack.c.b16 %v205, %v360
    %vm362 = vcmask 1046528
    %v363 = vrot.slane %v361, 1
    %v364 = vrot.slane %v210, 1
    %v365 = vsel %vm362, %v363, %v364
    %v366 = vrot.slane %v211, 1
    %v367 = vsel %vm362, %v364, %v366
    %v376 = vunpack.c.l.b16 %v351
    %v377 = vunpack.c.l.b16 %v352
    %v378 = vunpack.c.l.b16 %v353
    %v379 = vunpack.c.l.b16 %v354
    %v380 = vunpack.c.l.b16 %v355
    %v381 = vunpack.c.l.b16 %v356
    %v382 = vunpack.c.l.b16 %v357
    %v383 = vunpack.c.l.b16 %v358
    %v384 = vpack.c.b16 %v377, %v376
    %v385 = vpack.c.b16 %v379, %v378
    %v386 = vpack.c.b16 %v381, %v380
    %v387 = vpack.c.b16 %v383, %v382
    %v393 = vsel %vm260, %v365, 0
    %v396 = vsel %vm260, %v367, 0
    %v399 = vsel %vm260, %v366, 0
    %401 = vmatpush.bf16.msra.mxu0 0
    %402 = vmatpush.bf16.msra.mxu0 0
    %403 = vmatpush.bf16.msra.mxu0 0
    %404 = vmatpush.bf16.msra.mxu0 0
    %405 = vmatpush.bf16.msra.mxu0 %v387
    %406 = vmatpush.bf16.msra.mxu0 %v386
    %407 = vmatpush.bf16.msra.mxu0 %v385
    %408 = vmatpush.bf16.msra.mxu0 %v384
    %409 = vmatmul.bf16.gmra.mxu0 %v393
    %v410 = vpop.f32.mrf.mxu0
    %v411 = vadd.f32 0.0, %v410
    %v412 = vpop.f32.mrf.mxu0
    %v413 = vadd.f32 0.0, %v412
    %414 = vmatmul.bf16.gmra.mxu0 %v396
    %v415 = vpop.f32.mrf.mxu0
    %v416 = vadd.f32 0.0, %v415
    %v417 = vpop.f32.mrf.mxu0
    %v418 = vadd.f32 0.0, %v417
    %419 = vmatmul.bf16.gmra.mxu0 %v399
    %v420 = vpop.f32.mrf.mxu0
    %v421 = vadd.f32 0.0, %v420
    %v422 = vpop.f32.mrf.mxu0
    %423 = vdwg.mxu0
    %v424 = vadd.f32 %v337, %v411
    %v425 = vadd.f32 %v339, %v413
    %v426 = vadd.f32 %v342, %v416
    %v427 = vadd.f32 %v344, %v418
    %v428 = vadd.f32 %v347, %v421
    %v429 = vld [vmem:[%s2] sm:$0x1]
    %v431 = vperm.slane %v429, 0
    %v433 = vadd.f32 %v424, %v431
    %v434 = vadd.f32 %v425, %v431
    %v435 = vmax.f32 %v433, 0.0
    %v436 = vmax.f32 %v434, 0.0
    %v437 = vpack.c.bf16 %v435, %v435
    %v438 = vpack.c.bf16 %v436, %v436
    %v440 = vshrl.u32 %v437, 16
    %v442 = vrot.slane %v440, 7
    %v443 = vshll.u32 %v437, 16
    %v445 = vor.u32 %v442, %v443
    %v446 = vrot.slane %v442, 4
    %v448 = vshrl.u32 %v438, 16
    %v450 = vrot.slane %v448, 7
    %v451 = vshll.u32 %v438, 16
    %v453 = vor.u32 %v450, %v451
    %v454 = vsel %vm105, %v446, %v453
    %v455 = vrot.slane %v450, 4
    %vm459 = vcmask 1043456
    %vm460 = vmand %vm459, %vm127
    %v461 = vld [vmem:[#allocation3] sm:$0xf]
    %v462 = vsel %vm460, %v445, %v461
    %463 = vst [vmem:[#allocation3] sm:$0xf] %v462
    %464 = vst [vmem:[#allocation3 + $0x4] sm:$0xf] %v454
    %v465 = vld [vmem:[#allocation3 + $0x8] sm:$0x1]
    %v466 = vsel %vm88, %v455, %v465
    %467 = vst [vmem:[#allocation3 + $0x8] sm:$0x1] %v466
    %v468 = vadd.f32 %v426, %v431
    %v469 = vadd.f32 %v427, %v431
    %v470 = vadd.f32 %v428, %v431
    %v471 = vmax.f32 %v468, 0.0
    %v472 = vmax.f32 %v469, 0.0
    %v473 = vmax.f32 %v470, 0.0
    %v474 = vpack.c.bf16 %v471, %v471
    %v475 = vpack.c.bf16 %v472, %v472
    %v476 = vpack.c.bf16 %v473, %v473
    %v478 = vshrl.u32 %v474, 16
    %v480 = vrot.slane %v478, 7
    %v481 = vshll.u32 %v474, 16
    %v483 = vor.u32 %v480, %v481
    %v484 = vrot.slane %v480, 4
    %v486 = vshrl.u32 %v475, 16
    %v488 = vrot.slane %v486, 7
    %v489 = vshll.u32 %v475, 16
    %v491 = vor.u32 %v488, %v489
    %v492 = vsel %vm105, %v484, %v491
    %v493 = vrot.slane %v488, 4
    %v495 = vshrl.u32 %v476, 16
    %v497 = vrot.slane %v495, 7
    %v498 = vshll.u32 %v476, 16
    %v500 = vor.u32 %v497, %v498
    %v501 = vsel %vm105, %v493, %v500
    %vm505 = vcmask 1043457
    %vm506 = vmand %vm505, %vm76
    %v507 = vld [vmem:[#allocation3 + $0x8] sm:$0xe]
    %v508 = vsel %vm506, %v483, %v507
    %509 = vst [vmem:[#allocation3 + $0x8] sm:$0xe] %v508
    %510 = vst [vmem:[#allocation3 + $0xc] sm:$0xf] %v492
    %vm511 = vmand %vm97, %vm140
    %v512 = vld [vmem:[#allocation3 + $0x10] sm:$0x3]
    %v513 = vsel %vm511, %v501, %v512
    %514 = vst [vmem:[#allocation3 + $0x10] sm:$0x3] %v513
    %v515 = vld [vmem:[#allocation3] sm:$0xf]
    %v516 = vld [vmem:[#allocation3 + $0x4] sm:$0xf]
    %v517 = vld [vmem:[#allocation3 + $0x8] sm:$0xf]
    %v518 = vld [vmem:[#allocation3 + $0xc] sm:$0xf]
    %v519 = vld [vmem:[#allocation3 + $0x10] sm:$0x1]
    %v520 = vld [vmem:[#allocation3 + $0x10] sm:$0x3]
    %v521 = vld [vmem:[#allocation3] sm:$0xe]
    %v522 = vld [vmem:[#allocation9] sm:$0xf]
    %v523 = vld [vmem:[#allocation9 + $0x4] sm:$0xf]
    %v524 = vld [vmem:[#allocation9 + $0x8] sm:$0xf]
    %v525 = vld [vmem:[#allocation9 + $0xc] sm:$0xf]
    %v526 = vld [vmem:[#allocation9 + $0x10] sm:$0xf]
    %v527 = vld [vmem:[#allocation9 + $0x14] sm:$0xf]
    %v528 = vld [vmem:[#allocation9 + $0x18] sm:$0xf]
    %v529 = vld [vmem:[#allocation9 + $0x1c] sm:$0xf]
    %v530 = vld [vmem:[#allocation9 + $0x20] sm:$0xf]
    %v531 = vld [vmem:[#allocation9 + $0x24] sm:$0xf]
    %v532 = vld [vmem:[#allocation9 + $0x28] sm:$0xf]
    %v533 = vld [vmem:[#allocation9 + $0x2c] sm:$0xf]
    %v534 = vld [vmem:[#allocation9 + $0x30] sm:$0xf]
    %v535 = vld [vmem:[#allocation9 + $0x34] sm:$0xf]
    %v536 = vld [vmem:[#allocation9 + $0x38] sm:$0xf]
    %v537 = vld [vmem:[#allocation9 + $0x3c] sm:$0xf]
    %s538 = scalar_lea.vmem [#allocation9], 64
    %v539 = vld [vmem:[%s538] sm:$0xf]
    %v540 = vld [vmem:[%s538 + $0x4] sm:$0xf]
    %v541 = vld [vmem:[%s538 + $0x8] sm:$0xf]
    %v542 = vld [vmem:[%s538 + $0xc] sm:$0xf]
    %v543 = vld [vmem:[%s538 + $0x10] sm:$0xf]
    %v544 = vld [vmem:[%s538 + $0x14] sm:$0xf]
    %v545 = vld [vmem:[%s538 + $0x18] sm:$0xf]
    %v546 = vld [vmem:[%s538 + $0x1c] sm:$0xf]
    %v547 = vld [vmem:[%s538 + $0x20] sm:$0xf]
    %v548 = vld [vmem:[%s538 + $0x24] sm:$0xf]
    %v549 = vld [vmem:[%s538 + $0x28] sm:$0xf]
    %v550 = vld [vmem:[%s538 + $0x2c] sm:$0xf]
    %v551 = vld [vmem:[%s538 + $0x30] sm:$0xf]
    %v552 = vld [vmem:[%s538 + $0x34] sm:$0xf]
    %v553 = vld [vmem:[%s538 + $0x38] sm:$0xf]
    %v554 = vld [vmem:[%s538 + $0x3c] sm:$0xf]
    %v560 = vunpack.c.l.b16 %v515
    %v561 = vunpack.c.l.b16 %v516
    %v562 = vunpack.c.l.b16 %v517
    %v563 = vunpack.c.l.b16 %v518
    %v564 = vunpack.c.l.b16 %v520
    %v565 = vpack.c.b16 %v561, %v560
    %v566 = vpack.c.b16 %v563, %v562
    %v567 = vpack.c.b16 %v564, %v564
    %v569 = vshrl.u32 %v565, 16
    %v571 = vshll.u32 %v565, 16
    %v573 = vrot.slane %v571, 1
    %v574 = vor.u32 %v569, %v573
    %v576 = vshll.u32 %v566, 16
    %v578 = vrot.slane %v576, 1
    %v579 = vsel %vm212, %v574, %v578
    %v580 = vshrl.u32 %v566, 16
    %v582 = vor.u32 %v580, %v578
    %v584 = vshll.u32 %v567, 16
    %v586 = vrot.slane %v584, 1
    %v587 = vsel %vm212, %v582, %v586
    %v588 = vshrl.u32 %v567, 16
    %v590 = vor.u32 %v588, %v586
    %v610 = vunpack.c.l.b16 %v539
    %v611 = vunpack.c.l.b16 %v540
    %v612 = vunpack.c.l.b16 %v541
    %v613 = vunpack.c.l.b16 %v542
    %v614 = vunpack.c.l.b16 %v543
    %v615 = vunpack.c.l.b16 %v544
    %v616 = vunpack.c.l.b16 %v545
    %v617 = vunpack.c.l.b16 %v546
    %v618 = vunpack.c.l.b16 %v547
    %v619 = vunpack.c.l.b16 %v548
    %v620 = vunpack.c.l.b16 %v549
    %v621 = vunpack.c.l.b16 %v550
    %v622 = vunpack.c.l.b16 %v551
    %v623 = vunpack.c.l.b16 %v552
    %v624 = vunpack.c.l.b16 %v553
    %v625 = vunpack.c.l.b16 %v554
    %v626 = vpack.c.b16 %v611, %v610
    %v627 = vpack.c.b16 %v613, %v612
    %v628 = vpack.c.b16 %v615, %v614
    %v629 = vpack.c.b16 %v617, %v616
    %v630 = vpack.c.b16 %v619, %v618
    %v631 = vpack.c.b16 %v621, %v620
    %v632 = vpack.c.b16 %v623, %v622
    %v633 = vpack.c.b16 %v625, %v624
    %642 = vmatpush.bf16.msra.mxu0 %v633
    %643 = vmatpush.bf16.msra.mxu0 %v632
    %644 = vmatpush.bf16.msra.mxu0 %v631
    %645 = vmatpush.bf16.msra.mxu0 %v630
    %646 = vmatpush.bf16.msra.mxu0 %v629
    %647 = vmatpush.bf16.msra.mxu0 %v628
    %648 = vmatpush.bf16.msra.mxu0 %v627
    %649 = vmatpush.bf16.msra.mxu0 %v626
    %650 = vmatmul.bf16.gmra.mxu0 %v579
    %v651 = vpop.f32.mrf.mxu0
    %v652 = vadd.f32 0.0, %v651
    %v653 = vpop.f32.mrf.mxu0
    %v654 = vadd.f32 0.0, %v653
    %655 = vmatmul.bf16.gmra.mxu0 %v587
    %v656 = vpop.f32.mrf.mxu0
    %v657 = vadd.f32 0.0, %v656
    %v658 = vpop.f32.mrf.mxu0
    %v659 = vadd.f32 0.0, %v658
    %660 = vmatmul.bf16.gmra.mxu0 %v590
    %v661 = vpop.f32.mrf.mxu0
    %v662 = vadd.f32 0.0, %v661
    %v663 = vpop.f32.mrf.mxu0
    %664 = vdwg.mxu0
    %v666 = vunpack.c.l.b16 %v519
    %v667 = vpack.c.b16 %v666, %v666
    %v687 = vunpack.c.l.b16 %v522
    %v688 = vunpack.c.l.b16 %v523
    %v689 = vunpack.c.l.b16 %v524
    %v690 = vunpack.c.l.b16 %v525
    %v691 = vunpack.c.l.b16 %v526
    %v692 = vunpack.c.l.b16 %v527
    %v693 = vunpack.c.l.b16 %v528
    %v694 = vunpack.c.l.b16 %v529
    %v695 = vunpack.c.l.b16 %v530
    %v696 = vunpack.c.l.b16 %v531
    %v697 = vunpack.c.l.b16 %v532
    %v698 = vunpack.c.l.b16 %v533
    %v699 = vunpack.c.l.b16 %v534
    %v700 = vunpack.c.l.b16 %v535
    %v701 = vunpack.c.l.b16 %v536
    %v702 = vunpack.c.l.b16 %v537
    %v703 = vpack.c.b16 %v688, %v687
    %v704 = vpack.c.b16 %v690, %v689
    %v705 = vpack.c.b16 %v692, %v691
    %v706 = vpack.c.b16 %v694, %v693
    %v707 = vpack.c.b16 %v696, %v695
    %v708 = vpack.c.b16 %v698, %v697
    %v709 = vpack.c.b16 %v700, %v699
    %v710 = vpack.c.b16 %v702, %v701
    %719 = vmatpush.bf16.msra.mxu0 %v710
    %720 = vmatpush.bf16.msra.mxu0 %v709
    %721 = vmatpush.bf16.msra.mxu0 %v708
    %722 = vmatpush.bf16.msra.mxu0 %v707
    %723 = vmatpush.bf16.msra.mxu0 %v706
    %724 = vmatpush.bf16.msra.mxu0 %v705
    %725 = vmatpush.bf16.msra.mxu0 %v704
    %726 = vmatpush.bf16.msra.mxu0 %v703
    %727 = vmatmul.bf16.gmra.mxu0 %v565
    %v728 = vpop.f32.mrf.mxu0
    %v729 = vadd.f32 %v652, %v728
    %v730 = vpop.f32.mrf.mxu0
    %v731 = vadd.f32 %v654, %v730
    %732 = vmatmul.bf16.gmra.mxu0 %v566
    %v733 = vpop.f32.mrf.mxu0
    %v734 = vadd.f32 %v657, %v733
    %v735 = vpop.f32.mrf.mxu0
    %v736 = vadd.f32 %v659, %v735
    %737 = vmatmul.bf16.gmra.mxu0 %v667
    %v738 = vpop.f32.mrf.mxu0
    %v739 = vadd.f32 %v662, %v738
    %v740 = vpop.f32.mrf.mxu0
    %741 = vdwg.mxu0
    %s742 = scalar_lea.vmem [#allocation9], 128
    %v743 = vld [vmem:[%s742] sm:$0xf]
    %v744 = vld [vmem:[%s742 + $0x4] sm:$0xf]
    %v745 = vld [vmem:[%s742 + $0x8] sm:$0xf]
    %v746 = vld [vmem:[%s742 + $0xc] sm:$0xf]
    %v747 = vld [vmem:[%s742 + $0x10] sm:$0xf]
    %v748 = vld [vmem:[%s742 + $0x14] sm:$0xf]
    %v749 = vld [vmem:[%s742 + $0x18] sm:$0xf]
    %v750 = vld [vmem:[%s742 + $0x1c] sm:$0xf]
    %v751 = vld [vmem:[%s742 + $0x20] sm:$0xf]
    %v752 = vld [vmem:[%s742 + $0x24] sm:$0xf]
    %v753 = vld [vmem:[%s742 + $0x28] sm:$0xf]
    %v754 = vld [vmem:[%s742 + $0x2c] sm:$0xf]
    %v755 = vld [vmem:[%s742 + $0x30] sm:$0xf]
    %v756 = vld [vmem:[%s742 + $0x34] sm:$0xf]
    %v757 = vld [vmem:[%s742 + $0x38] sm:$0xf]
    %v758 = vld [vmem:[%s742 + $0x3c] sm:$0xf]
    %v760 = vunpack.c.l.b16 %v521
    %v761 = vpack.c.b16 %v561, %v760
    %v762 = vrot.slane %v761, 1
    %v763 = vrot.slane %v566, 1
    %v764 = vsel %vm362, %v762, %v763
    %v765 = vrot.slane %v567, 1
    %v766 = vsel %vm362, %v763, %v765
    %v786 = vunpack.c.l.b16 %v743
    %v787 = vunpack.c.l.b16 %v744
    %v788 = vunpack.c.l.b16 %v745
    %v789 = vunpack.c.l.b16 %v746
    %v790 = vunpack.c.l.b16 %v747
    %v791 = vunpack.c.l.b16 %v748
    %v792 = vunpack.c.l.b16 %v749
    %v793 = vunpack.c.l.b16 %v750
    %v794 = vunpack.c.l.b16 %v751
    %v795 = vunpack.c.l.b16 %v752
    %v796 = vunpack.c.l.b16 %v753
    %v797 = vunpack.c.l.b16 %v754
    %v798 = vunpack.c.l.b16 %v755
    %v799 = vunpack.c.l.b16 %v756
    %v800 = vunpack.c.l.b16 %v757
    %v801 = vunpack.c.l.b16 %v758
    %v802 = vpack.c.b16 %v787, %v786
    %v803 = vpack.c.b16 %v789, %v788
    %v804 = vpack.c.b16 %v791, %v790
    %v805 = vpack.c.b16 %v793, %v792
    %v806 = vpack.c.b16 %v795, %v794
    %v807 = vpack.c.b16 %v797, %v796
    %v808 = vpack.c.b16 %v799, %v798
    %v809 = vpack.c.b16 %v801, %v800
    %818 = vmatpush.bf16.msra.mxu0 %v809
    %819 = vmatpush.bf16.msra.mxu0 %v808
    %820 = vmatpush.bf16.msra.mxu0 %v807
    %821 = vmatpush.bf16.msra.mxu0 %v806
    %822 = vmatpush.bf16.msra.mxu0 %v805
    %823 = vmatpush.bf16.msra.mxu0 %v804
    %824 = vmatpush.bf16.msra.mxu0 %v803
    %825 = vmatpush.bf16.msra.mxu0 %v802
    %826 = vmatmul.bf16.gmra.mxu0 %v764
    %v827 = vpop.f32.mrf.mxu0
    %v828 = vadd.f32 0.0, %v827
    %v829 = vpop.f32.mrf.mxu0
    %v830 = vadd.f32 0.0, %v829
    %831 = vmatmul.bf16.gmra.mxu0 %v766
    %v832 = vpop.f32.mrf.mxu0
    %v833 = vadd.f32 0.0, %v832
    %v834 = vpop.f32.mrf.mxu0
    %v835 = vadd.f32 0.0, %v834
    %836 = vmatmul.bf16.gmra.mxu0 %v765
    %v837 = vpop.f32.mrf.mxu0
    %v838 = vadd.f32 0.0, %v837
    %v839 = vpop.f32.mrf.mxu0
    %840 = vdwg.mxu0
    %v841 = vadd.f32 %v729, %v828
    %v842 = vadd.f32 %v731, %v830
    %v843 = vadd.f32 %v734, %v833
    %v844 = vadd.f32 %v736, %v835
    %v845 = vadd.f32 %v739, %v838
    %v846 = vld [vmem:[%s4] sm:$0x1]
    %v848 = vperm.slane %v846, 0
    %v850 = vadd.f32 %v841, %v848
    %v851 = vadd.f32 %v842, %v848
    %v852 = vmax.f32 %v850, 0.0
    %v853 = vmax.f32 %v851, 0.0
    %854 = vst [vmem:[#allocation10] sm:$0xff] %v852
    %855 = vst [vmem:[#allocation10 + $0x8] sm:$0xff] %v853
    %v856 = vadd.f32 %v843, %v848
    %v857 = vadd.f32 %v844, %v848
    %v858 = vadd.f32 %v845, %v848
    %v859 = vmax.f32 %v856, 0.0
    %v860 = vmax.f32 %v857, 0.0
    %v861 = vmax.f32 %v858, 0.0
    %s862 = scalar_lea.vmem [#allocation10], 16
    %863 = vst [vmem:[%s862 - $0x2] sm:$0xfc] %v859
    %864 = vst [vmem:[%s862 + $0x6] sm:$0xff] %v860
    %865 = vst [vmem:[%s862 + $0xe] sm:$0x3] %v861
    // Predicated region
    $region34: #{tpu_custom_call.1} parent=1 // pred_check
      _
    $region35: #{tpu_custom_call.1} parent=1 // pred_check_branch
      %867 = sbr.rel (0) target = $region37
    $region36: #{tpu_custom_call.1} parent=1 // pred_region
      %869 = vsyncadd [#allocation6], 0
      %s870 = sshll.u32 [#allocation10], 4
      %s871 = int_to_ptr.vmem [resolvable:$true] %s870
      %s872 = sshll.u32 %s5, 4
      %s873 = int_to_ptr.hbm [resolvable:$true] %s872
      %878 = dma.vmem_to_hbm [thread:$0]  %s871, 512, %s873, [#allocation6], 128, 128, 8
    $region37: #{tpu_custom_call.1} parent=1 // pred_fallthru
      _
    // Predicated region
    $region38: #{tpu_custom_call.1} parent=1 // pred_check
      _
    $region39: #{tpu_custom_call.1} parent=1 // pred_check_branch
      %880 = sbr.rel (0) target = $region41
    $region40: #{tpu_custom_call.1} parent=1 // pred_region
      %882 = dma.done [#allocation6], 512
    $region41: #{tpu_custom_call.1} parent=1 // pred_fallthru
      _
    %883 = vsyncpa [#allocation5], 1
    %884 = vsyncpa [#allocation8], 1
    %885 = vsyncpa [#allocation6], 1

// kernel: tpu_custom_call.1
$region0: #{tpu_custom_call.1}
  #allocation0 [shape = 'u32[]', space=smem, size = 0x4, offset = 0x4, fixed_abs, tag = 'smem constant byte address 0x4 - core index']
  #allocation1 [shape = 'u32[72,128]{1,0:T(1,128)}', space=vmem, size = 0x9000, scoped, tag = 'internal scratch']
  #allocation2 [shape = 'bf16[36,64]{1,0:T(8,128)(2,1)}', space=vmem, size = 0x2800, scoped, tag = 'scratch operand']
  #allocation3 [shape = 'bf16[36,128]{1,0:T(8,128)(2,1)}', space=vmem, size = 0x2800, scoped, tag = 'scratch operand']
  %s0 = inlined_call_operand.hbm [shape: bf16[2,16,64], index: 0, kind: input, shape index: {}]
  %s1 = inlined_call_operand.hbm [shape: bf16[3,64,128], index: 1, kind: input, shape index: {}]
  %s2 = inlined_call_operand.vmem [shape: f32[1,128], index: 2, kind: input, shape index: {}]
  %s3 = inlined_call_operand.hbm [shape: bf16[3,128,128], index: 3, kind: input, shape index: {}]
  %s4 = inlined_call_operand.vmem [shape: f32[1,128], index: 4, kind: input, shape index: {}]
  %s5 = inlined_call_operand.hbm [shape: f32[2,16,128], index: 5, kind: output, shape index: {}]
  %s6 = sld [smem:[#allocation0]]
  $region42: #{tpu_custom_call.1} parent=0
    _
  %s8 = ssub.s32 1, %s6
  %s9 = scalar_select 0, %s8, %s6
  $region1: #{tpu_custom_call.1} parent=0
    #allocation4 [shape = 'u8[8192]{0}', space=vmem, size = 0x2000, scoped, tag = 'input window, operand 0, single buffered']
    #allocation5 [shape = 's32[1]{0}', space=sflag, size = 0x4, scoped, tag = 'scoped memory for tpu_custom_call.1']
    #allocation6 [shape = 's32[1]{0}', space=sflag, size = 0x4, scoped, tag = 'scoped memory for tpu_custom_call.1']
    #allocation7 [shape = 'u8[49152]{0}', space=vmem, size = 0xc000, scoped, tag = 'input window, operand 1, single buffered']
    #allocation8 [shape = 's32[1]{0}', space=sflag, size = 0x4, scoped, tag = 'scoped memory for tpu_custom_call.1']
    #allocation9 [shape = 'u8[98304]{0}', space=vmem, size = 0x18000, scoped, tag = 'input window, operand 3, single buffered']
    #allocation10 [shape = 'u8[16384]{0}', space=vmem, size = 0x4000, scoped, tag = 'output window, operand 0, single buffered']
    %10 = vsyncpa [#allocation5], 0
    %11 = vsyncpa [#allocation8], 0
    %12 = vsyncpa [#allocation6], 0
    // Predicated region
    $region2: #{tpu_custom_call.1} parent=1 // pred_check
      _
    $region3: #{tpu_custom_call.1} parent=1 // pred_check_branch
      %14 = sbr.rel (0) target = $region5
    $region4: #{tpu_custom_call.1} parent=1 // pred_region
      %16 = vsyncadd [#allocation5], 0
      %s17 = sshll.u32 %s0, 4
      %s18 = int_to_ptr.hbm [resolvable:$true] %s17
      %s19 = sshll.u32 [#allocation4], 4
      %s20 = int_to_ptr.vmem [resolvable:$true] %s19
      %25 = dma.hbm_to_vmem [thread:$0]  %s18, 256, %s20, [#allocation5], 64, 64, 4
    $region5: #{tpu_custom_call.1} parent=1 // pred_fallthru
      _
    // Predicated region
    $region6: #{tpu_custom_call.1} parent=1 // pred_check
      _
    $region7: #{tpu_custom_call.1} parent=1 // pred_check_branch
      %27 = sbr.rel (0) target = $region9
    $region8: #{tpu_custom_call.1} parent=1 // pred_region
      %29 = vsyncadd [#allocation8], 0
      %s30 = sshll.u32 %s1, 4
      %s31 = int_to_ptr.hbm [resolvable:$true] %s30
      %s32 = sshll.u32 [#allocation7], 4
      %s33 = int_to_ptr.vmem [resolvable:$true] %s32
      %38 = dma.hbm_to_vmem [thread:$0]  %s31, 1536, %s33, [#allocation8], 64, 64, 4
    $region9: #{tpu_custom_call.1} parent=1 // pred_fallthru
      _
    // Predicated region
    $region10: #{tpu_custom_call.1} parent=1 // pred_check
      _
    $region11: #{tpu_custom_call.1} parent=1 // pred_check_branch
      %40 = sbr.rel (0) target = $region13
    $region12: #{tpu_custom_call.1} parent=1 // pred_region
      _
    $region13: #{tpu_custom_call.1} parent=1 // pred_fallthru
      _
    // Predicated region
    $region14: #{tpu_custom_call.1} parent=1 // pred_check
      _
    $region15: #{tpu_custom_call.1} parent=1 // pred_check_branch
      %42 = sbr.rel (0) target = $region17
    $region16: #{tpu_custom_call.1} parent=1 // pred_region
      %44 = vsyncadd [#allocation8], 0
      %s45 = sshll.u32 %s3, 4
      %s46 = int_to_ptr.hbm [resolvable:$true] %s45
      %s47 = sshll.u32 [#allocation9], 4
      %s48 = int_to_ptr.vmem [resolvable:$true] %s47
      %53 = dma.hbm_to_vmem [thread:$0]  %s46, 3072, %s48, [#allocation8], 64, 64, 4
    $region17: #{tpu_custom_call.1} parent=1 // pred_fallthru
      _
    // Predicated region
    $region18: #{tpu_custom_call.1} parent=1 // pred_check
      _
    $region19: #{tpu_custom_call.1} parent=1 // pred_check_branch
      %55 = sbr.rel (0) target = $region21
    $region20: #{tpu_custom_call.1} parent=1 // pred_region
      _
    $region21: #{tpu_custom_call.1} parent=1 // pred_fallthru
      _
    // Predicated region
    $region22: #{tpu_custom_call.1} parent=1 // pred_check
      _
    $region23: #{tpu_custom_call.1} parent=1 // pred_check_branch
      %57 = sbr.rel (0) target = $region25
    $region24: #{tpu_custom_call.1} parent=1 // pred_region
      %59 = dma.done [#allocation5], 256
    $region25: #{tpu_custom_call.1} parent=1 // pred_fallthru
      _
    // Predicated region
    $region26: #{tpu_custom_call.1} parent=1 // pred_check
      _
    $region27: #{tpu_custom_call.1} parent=1 // pred_check_branch
      %61 = sbr.rel (0) target = $region29
    $region28: #{tpu_custom_call.1} parent=1 // pred_region
      %63 = dma.done [#allocation8], 1536
    $region29: #{tpu_custom_call.1} parent=1 // pred_fallthru
      _
    // Predicated region
    $region30: #{tpu_custom_call.1} parent=1 // pred_check
      _
    $region31: #{tpu_custom_call.1} parent=1 // pred_check_branch
      %65 = sbr.rel (0) target = $region33
    $region32: #{tpu_custom_call.1} parent=1 // pred_region
      %67 = dma.done [#allocation8], 3072
    $region33: #{tpu_custom_call.1} parent=1 // pred_fallthru
      _
    %vm69 = vcmask 516096
    %vm70 = vsmask.f32 256
    %vm71 = vmand %vm69, %vm70
    %v72 = vld [vmem:[#allocation2] sm:$0x1]
    %v73 = vsel %vm71, 0, %v72
    %74 = vst [vmem:[#allocation2] sm:$0x1] %v73
    %vm75 = vcmask 517121
    %vm76 = vsmask.f32 7942
    %vm77 = vmand %vm75, %vm76
    %v78 = vld [vmem:[#allocation2 + $0x10] sm:$0x2]
    %v79 = vsel %vm77, 0, %v78
    %80 = vst [vmem:[#allocation2 + $0x10] sm:$0x2] %v79
    %vm81 = vcmask 517120
    %vm82 = vsmask.f32 1282
    %vm83 = vmand %vm81, %vm82
    %v84 = vld [vmem:[#allocation2 + $0x8] sm:$0x3]
    %v85 = vsel %vm83, 0, %v84
    %86 = vst [vmem:[#allocation2 + $0x8] sm:$0x3] %v85
    %vm87 = vcmask 1040384
    %vm88 = vmand %vm87, %vm70
    %v89 = vld [vmem:[#allocation3] sm:$0x1]
    %v90 = vsel %vm88, 0, %v89
    %91 = vst [vmem:[#allocation3] sm:$0x1] %v90
    %vm92 = vcmask 1041409
    %vm93 = vmand %vm92, %vm76
    %v94 = vld [vmem:[#allocation3 + $0x10] sm:$0x2]
    %v95 = vsel %vm93, 0, %v94
    %96 = vst [vmem:[#allocation3 + $0x10] sm:$0x2] %v95
    %vm97 = vcmask 1041408
    %vm98 = vmand %vm97, %vm82
    %v99 = vld [vmem:[#allocation3 + $0x8] sm:$0x3]
    %v100 = vsel %vm98, 0, %v99
    %101 = vst [vmem:[#allocation3 + $0x8] sm:$0x3] %v100
    %v102 = vld [vmem:[#allocation4] sm:$0xf]
    %v103 = vld [vmem:[#allocation4 + $0x4] sm:$0xf]
    %vm104 = vsmask.f32 4368
    %vm105 = vmor %vm70, %vm104
    %v107 = vshrl.u32 %v102, 16
    %v109 = vrot.slane %v107, 7
    %v110 = vshll.u32 %v102, 16
    %v112 = vor.u32 %v109, %v110
    %v113 = vrot.slane %v109, 4
    %v115 = vshrl.u32 %v103, 16
    %v117 = vrot.slane %v115, 7
    %v118 = vshll.u32 %v103, 16
    %v120 = vor.u32 %v117, %v118
    %v121 = vsel %vm105, %v113, %v120
    %v122 = vrot.slane %v117, 4
    %vm126 = vcmask 519168
    %vm127 = vsmask.f32 7938
    %vm128 = vmand %vm126, %vm127
    %v129 = vld [vmem:[#allocation2] sm:$0xf]
    %v130 = vsel %vm128, %v112, %v129
    %131 = vst [vmem:[#allocation2] sm:$0xf] %v130
    %vm132 = vcmask 519168
    %133 = vst.msk [vmem:[#allocation2 + $0x4] sm:$0xf] %vm132, %v121
    %v134 = vld [vmem:[#allocation2 + $0x8] sm:$0x1]
    %v135 = vsel %vm71, %v122, %v134
    %136 = vst [vmem:[#allocation2 + $0x8] sm:$0x1] %v135
    %s137 = scalar_lea.vmem [#allocation4], 8
    %v138 = vld [vmem:[%s137] sm:$0xf]
    %v139 = vld [vmem:[%s137 + $0x4] sm:$0xf]
    %vm140 = vsmask.f32 1280
    %vm141 = vsmask.f32 5392
    %vm142 = vmor %vm140, %vm141
    %v144 = vshrl.u32 %v138, 16
    %v146 = vrot.slane %v144, 6
    %v147 = vshll.u32 %v138, 16
    %v149 = vrot.slane %v147, 7
    %v150 = vor.u32 %v146, %v149
    %v151 = vrot.slane %v150, 4
    %v153 = vshrl.u32 %v139, 16
    %v155 = vrot.slane %v153, 6
    %v156 = vshll.u32 %v139, 16
    %v158 = vrot.slane %v156, 7
    %v159 = vor.u32 %v155, %v158
    %v160 = vsel %vm142, %v151, %v159
    %v161 = vrot.slane %v159, 4
    %vm165 = vcmask 519169
    %vm166 = vmand %vm165, %vm76
    %v167 = vld [vmem:[#allocation2 + $0x8] sm:$0xe]
    %v168 = vsel %vm166, %v150, %v167
    %169 = vst [vmem:[#allocation2 + $0x8] sm:$0xe] %v168
    %170 = vst.msk [vmem:[#allocation2 + $0xc] sm:$0xf] %vm132, %v160
    %vm171 = vmand %vm81, %vm140
    %v172 = vld [vmem:[#allocation2 + $0x10] sm:$0x3]
    %v173 = vsel %vm171, %v161, %v172
    %174 = vst [vmem:[#allocation2 + $0x10] sm:$0x3] %v173
    %v175 = vld [vmem:[#allocation2] sm:$0xf]
    %v176 = vld [vmem:[#allocation2 + $0x4] sm:$0xf]
    %v177 = vld [vmem:[#allocation2 + $0x8] sm:$0xf]
    %v178 = vld [vmem:[#allocation2 + $0xc] sm:$0xf]
    %v179 = vld [vmem:[#allocation2 + $0x10] sm:$0x1]
    %v180 = vld [vmem:[#allocation2 + $0x10] sm:$0x3]
    %v181 = vld [vmem:[#allocation2] sm:$0xe]
    %v182 = vld [vmem:[#allocation7] sm:$0xf]
    %v183 = vld [vmem:[#allocation7 + $0x4] sm:$0xf]
    %v184 = vld [vmem:[#allocation7 + $0x8] sm:$0xf]
    %v185 = vld [vmem:[#allocation7 + $0xc] sm:$0xf]
    %v186 = vld [vmem:[#allocation7 + $0x10] sm:$0xf]
    %v187 = vld [vmem:[#allocation7 + $0x14] sm:$0xf]
    %v188 = vld [vmem:[#allocation7 + $0x18] sm:$0xf]
    %v189 = vld [vmem:[#allocation7 + $0x1c] sm:$0xf]
    %s190 = scalar_lea.vmem [#allocation7], 32
    %v191 = vld [vmem:[%s190] sm:$0xf]
    %v192 = vld [vmem:[%s190 + $0x4] sm:$0xf]
    %v193 = vld [vmem:[%s190 + $0x8] sm:$0xf]
    %v194 = vld [vmem:[%s190 + $0xc] sm:$0xf]
    %v195 = vld [vmem:[%s190 + $0x10] sm:$0xf]
    %v196 = vld [vmem:[%s190 + $0x14] sm:$0xf]
    %v197 = vld [vmem:[%s190 + $0x18] sm:$0xf]
    %v198 = vld [vmem:[%s190 + $0x1c] sm:$0xf]
    %v204 = vunpack.c.l.b16 %v175
    %v205 = vunpack.c.l.b16 %v176
    %v206 = vunpack.c.l.b16 %v177
    %v207 = vunpack.c.l.b16 %v178
    %v208 = vunpack.c.l.b16 %v180
    %v209 = vpack.c.b16 %v205, %v204
    %v210 = vpack.c.b16 %v207, %v206
    %v211 = vpack.c.b16 %v208, %v208
    %vm212 = vsmask.f32 7424
    %v214 = vshrl.u32 %v209, 16
    %v216 = vshll.u32 %v209, 16
    %v218 = vrot.slane %v216, 1
    %v219 = vor.u32 %v214, %v218
    %v221 = vshll.u32 %v210, 16
    %v223 = vrot.slane %v221, 1
    %v224 = vsel %vm212, %v219, %v223
    %v225 = vshrl.u32 %v210, 16
    %v227 = vor.u32 %v225, %v223
    %v229 = vshll.u32 %v211, 16
    %v231 = vrot.slane %v229, 1
    %v232 = vsel %vm212, %v227, %v231
    %v233 = vshrl.u32 %v211, 16
    %v235 = vor.u32 %v233, %v231
    %v244 = vunpack.c.l.b16 %v191
    %v245 = vunpack.c.l.b16 %v192
    %v246 = vunpack.c.l.b16 %v193
    %v247 = vunpack.c.l.b16 %v194
    %v248 = vunpack.c.l.b16 %v195
    %v249 = vunpack.c.l.b16 %v196
    %v250 = vunpack.c.l.b16 %v197
    %v251 = vunpack.c.l.b16 %v198
    %v252 = vpack.c.b16 %v245, %v244
    %v253 = vpack.c.b16 %v247, %v246
    %v254 = vpack.c.b16 %v249, %v248
    %v255 = vpack.c.b16 %v251, %v250
    %vm260 = vcmask 523264
    %v262 = vsel %vm260, %v224, 0
    %v265 = vsel %vm260, %v232, 0
    %v268 = vsel %vm260, %v235, 0
    %270 = vmatpush.bf16.msra.mxu0 0
    %271 = vmatpush.bf16.msra.mxu0 0
    %272 = vmatpush.bf16.msra.mxu0 0
    %273 = vmatpush.bf16.msra.mxu0 0
    %274 = vmatpush.bf16.msra.mxu0 %v255
    %275 = vmatpush.bf16.msra.mxu0 %v254
    %276 = vmatpush.bf16.msra.mxu0 %v253
    %277 = vmatpush.bf16.msra.mxu0 %v252
    %278 = vmatmul.bf16.gmra.mxu0 %v262
    %v279 = vpop.f32.mrf.mxu0
    %v280 = vadd.f32 0.0, %v279
    %v281 = vpop.f32.mrf.mxu0
    %v282 = vadd.f32 0.0, %v281
    %283 = vmatmul.bf16.gmra.mxu0 %v265
    %v284 = vpop.f32.mrf.mxu0
    %v285 = vadd.f32 0.0, %v284
    %v286 = vpop.f32.mrf.mxu0
    %v287 = vadd.f32 0.0, %v286
    %288 = vmatmul.bf16.gmra.mxu0 %v268
    %v289 = vpop.f32.mrf.mxu0
    %v290 = vadd.f32 0.0, %v289
    %v291 = vpop.f32.mrf.mxu0
    %292 = vdwg.mxu0
    %v294 = vunpack.c.l.b16 %v179
    %v295 = vpack.c.b16 %v294, %v294
    %v304 = vunpack.c.l.b16 %v182
    %v305 = vunpack.c.l.b16 %v183
    %v306 = vunpack.c.l.b16 %v184
    %v307 = vunpack.c.l.b16 %v185
    %v308 = vunpack.c.l.b16 %v186
    %v309 = vunpack.c.l.b16 %v187
    %v310 = vunpack.c.l.b16 %v188
    %v311 = vunpack.c.l.b16 %v189
    %v312 = vpack.c.b16 %v305, %v304
    %v313 = vpack.c.b16 %v307, %v306
    %v314 = vpack.c.b16 %v309, %v308
    %v315 = vpack.c.b16 %v311, %v310
    %v320 = vsel %vm260, %v209, 0
    %v322 = vsel %vm260, %v210, 0
    %v325 = vsel %vm260, %v295, 0
    %327 = vmatpush.bf16.msra.mxu0 0
    %328 = vmatpush.bf16.msra.mxu0 0
    %329 = vmatpush.bf16.msra.mxu0 0
    %330 = vmatpush.bf16.msra.mxu0 0
    %331 = vmatpush.bf16.msra.mxu0 %v315
    %332 = vmatpush.bf16.msra.mxu0 %v314
    %333 = vmatpush.bf16.msra.mxu0 %v313
    %334 = vmatpush.bf16.msra.mxu0 %v312
    %335 = vmatmul.bf16.gmra.mxu0 %v320
    %v336 = vpop.f32.mrf.mxu0
    %v337 = vadd.f32 %v280, %v336
    %v338 = vpop.f32.mrf.mxu0
    %v339 = vadd.f32 %v282, %v338
    %340 = vmatmul.bf16.gmra.mxu0 %v322
    %v341 = vpop.f32.mrf.mxu0
    %v342 = vadd.f32 %v285, %v341
    %v343 = vpop.f32.mrf.mxu0
    %v344 = vadd.f32 %v287, %v343
    %345 = vmatmul.bf16.gmra.mxu0 %v325
    %v346 = vpop.f32.mrf.mxu0
    %v347 = vadd.f32 %v290, %v346
    %v348 = vpop.f32.mrf.mxu0
    %349 = vdwg.mxu0
    %s350 = scalar_lea.vmem [#allocation7], 64
    %v351 = vld [vmem:[%s350] sm:$0xf]
    %v352 = vld [vmem:[%s350 + $0x4] sm:$0xf]
    %v353 = vld [vmem:[%s350 + $0x8] sm:$0xf]
    %v354 = vld [vmem:[%s350 + $0xc] sm:$0xf]
    %v355 = vld [vmem:[%s350 + $0x10] sm:$0xf]
    %v356 = vld [vmem:[%s350 + $0x14] sm:$0xf]
    %v357 = vld [vmem:[%s350 + $0x18] sm:$0xf]
    %v358 = vld [vmem:[%s350 + $0x1c] sm:$0xf]
    %v360 = vunpack.c.l.b16 %v181
    %v361 = vpack.c.b16 %v205, %v360
    %vm362 = vcmask 1046528
    %v363 = vrot.slane %v361, 1
    %v364 = vrot.slane %v210, 1
    %v365 = vsel %vm362, %v363, %v364
    %v366 = vrot.slane %v211, 1
    %v367 = vsel %vm362, %v364, %v366
    %v376 = vunpack.c.l.b16 %v351
    %v377 = vunpack.c.l.b16 %v352
    %v378 = vunpack.c.l.b16 %v353
    %v379 = vunpack.c.l.b16 %v354
    %v380 = vunpack.c.l.b16 %v355
    %v381 = vunpack.c.l.b16 %v356
    %v382 = vunpack.c.l.b16 %v357
    %v383 = vunpack.c.l.b16 %v358
    %v384 = vpack.c.b16 %v377, %v376
    %v385 = vpack.c.b16 %v379, %v378
    %v386 = vpack.c.b16 %v381, %v380
    %v387 = vpack.c.b16 %v383, %v382
    %v393 = vsel %vm260, %v365, 0
    %v396 = vsel %vm260, %v367, 0
    %v399 = vsel %vm260, %v366, 0
    %401 = vmatpush.bf16.msra.mxu0 0
    %402 = vmatpush.bf16.msra.mxu0 0
    %403 = vmatpush.bf16.msra.mxu0 0
    %404 = vmatpush.bf16.msra.mxu0 0
    %405 = vmatpush.bf16.msra.mxu0 %v387
    %406 = vmatpush.bf16.msra.mxu0 %v386
    %407 = vmatpush.bf16.msra.mxu0 %v385
    %408 = vmatpush.bf16.msra.mxu0 %v384
    %409 = vmatmul.bf16.gmra.mxu0 %v393
    %v410 = vpop.f32.mrf.mxu0
    %v411 = vadd.f32 0.0, %v410
    %v412 = vpop.f32.mrf.mxu0
    %v413 = vadd.f32 0.0, %v412
    %414 = vmatmul.bf16.gmra.mxu0 %v396
    %v415 = vpop.f32.mrf.mxu0
    %v416 = vadd.f32 0.0, %v415
    %v417 = vpop.f32.mrf.mxu0
    %v418 = vadd.f32 0.0, %v417
    %419 = vmatmul.bf16.gmra.mxu0 %v399
    %v420 = vpop.f32.mrf.mxu0
    %v421 = vadd.f32 0.0, %v420
    %v422 = vpop.f32.mrf.mxu0
    %423 = vdwg.mxu0
    %v424 = vadd.f32 %v337, %v411
    %v425 = vadd.f32 %v339, %v413
    %v426 = vadd.f32 %v342, %v416
    %v427 = vadd.f32 %v344, %v418
    %v428 = vadd.f32 %v347, %v421
    %v429 = vld [vmem:[%s2] sm:$0x1]
    %v431 = vperm.slane %v429, 0
    %v433 = vadd.f32 %v424, %v431
    %v434 = vadd.f32 %v425, %v431
    %v435 = vmax.f32 %v433, 0.0
    %v436 = vmax.f32 %v434, 0.0
    %v437 = vpack.c.bf16 %v435, %v435
    %v438 = vpack.c.bf16 %v436, %v436
    %v440 = vshrl.u32 %v437, 16
    %v442 = vrot.slane %v440, 7
    %v443 = vshll.u32 %v437, 16
    %v445 = vor.u32 %v442, %v443
    %v446 = vrot.slane %v442, 4
    %v448 = vshrl.u32 %v438, 16
    %v450 = vrot.slane %v448, 7
    %v451 = vshll.u32 %v438, 16
    %v453 = vor.u32 %v450, %v451
    %v454 = vsel %vm105, %v446, %v453
    %v455 = vrot.slane %v450, 4
    %vm459 = vcmask 1043456
    %vm460 = vmand %vm459, %vm127
    %v461 = vld [vmem:[#allocation3] sm:$0xf]
    %v462 = vsel %vm460, %v445, %v461
    %463 = vst [vmem:[#allocation3] sm:$0xf] %v462
    %464 = vst [vmem:[#allocation3 + $0x4] sm:$0xf] %v454
    %v465 = vld [vmem:[#allocation3 + $0x8] sm:$0x1]
    %v466 = vsel %vm88, %v455, %v465
    %467 = vst [vmem:[#allocation3 + $0x8] sm:$0x1] %v466
    %v468 = vadd.f32 %v426, %v431
    %v469 = vadd.f32 %v427, %v431
    %v470 = vadd.f32 %v428, %v431
    %v471 = vmax.f32 %v468, 0.0
    %v472 = vmax.f32 %v469, 0.0
    %v473 = vmax.f32 %v470, 0.0
    %v474 = vpack.c.bf16 %v471, %v471
    %v475 = vpack.c.bf16 %v472, %v472
    %v476 = vpack.c.bf16 %v473, %v473
    %v478 = vshrl.u32 %v474, 16
    %v480 = vrot.slane %v478, 7
    %v481 = vshll.u32 %v474, 16
    %v483 = vor.u32 %v480, %v481
    %v484 = vrot.slane %v480, 4
    %v486 = vshrl.u32 %v475, 16
    %v488 = vrot.slane %v486, 7
    %v489 = vshll.u32 %v475, 16
    %v491 = vor.u32 %v488, %v489
    %v492 = vsel %vm105, %v484, %v491
    %v493 = vrot.slane %v488, 4
    %v495 = vshrl.u32 %v476, 16
    %v497 = vrot.slane %v495, 7
    %v498 = vshll.u32 %v476, 16
    %v500 = vor.u32 %v497, %v498
    %v501 = vsel %vm105, %v493, %v500
    %vm505 = vcmask 1043457
    %vm506 = vmand %vm505, %vm76
    %v507 = vld [vmem:[#allocation3 + $0x8] sm:$0xe]
    %v508 = vsel %vm506, %v483, %v507
    %509 = vst [vmem:[#allocation3 + $0x8] sm:$0xe] %v508
    %510 = vst [vmem:[#allocation3 + $0xc] sm:$0xf] %v492
    %vm511 = vmand %vm97, %vm140
    %v512 = vld [vmem:[#allocation3 + $0x10] sm:$0x3]
    %v513 = vsel %vm511, %v501, %v512
    %514 = vst [vmem:[#allocation3 + $0x10] sm:$0x3] %v513
    %v515 = vld [vmem:[#allocation3] sm:$0xf]
    %v516 = vld [vmem:[#allocation3 + $0x4] sm:$0xf]
    %v517 = vld [vmem:[#allocation3 + $0x8] sm:$0xf]
    %v518 = vld [vmem:[#allocation3 + $0xc] sm:$0xf]
    %v519 = vld [vmem:[#allocation3 + $0x10] sm:$0x1]
    %v520 = vld [vmem:[#allocation3 + $0x10] sm:$0x3]
    %v521 = vld [vmem:[#allocation3] sm:$0xe]
    %v522 = vld [vmem:[#allocation9] sm:$0xf]
    %v523 = vld [vmem:[#allocation9 + $0x4] sm:$0xf]
    %v524 = vld [vmem:[#allocation9 + $0x8] sm:$0xf]
    %v525 = vld [vmem:[#allocation9 + $0xc] sm:$0xf]
    %v526 = vld [vmem:[#allocation9 + $0x10] sm:$0xf]
    %v527 = vld [vmem:[#allocation9 + $0x14] sm:$0xf]
    %v528 = vld [vmem:[#allocation9 + $0x18] sm:$0xf]
    %v529 = vld [vmem:[#allocation9 + $0x1c] sm:$0xf]
    %v530 = vld [vmem:[#allocation9 + $0x20] sm:$0xf]
    %v531 = vld [vmem:[#allocation9 + $0x24] sm:$0xf]
    %v532 = vld [vmem:[#allocation9 + $0x28] sm:$0xf]
    %v533 = vld [vmem:[#allocation9 + $0x2c] sm:$0xf]
    %v534 = vld [vmem:[#allocation9 + $0x30] sm:$0xf]
    %v535 = vld [vmem:[#allocation9 + $0x34] sm:$0xf]
    %v536 = vld [vmem:[#allocation9 + $0x38] sm:$0xf]
    %v537 = vld [vmem:[#allocation9 + $0x3c] sm:$0xf]
    %s538 = scalar_lea.vmem [#allocation9], 64
    %v539 = vld [vmem:[%s538] sm:$0xf]
    %v540 = vld [vmem:[%s538 + $0x4] sm:$0xf]
    %v541 = vld [vmem:[%s538 + $0x8] sm:$0xf]
    %v542 = vld [vmem:[%s538 + $0xc] sm:$0xf]
    %v543 = vld [vmem:[%s538 + $0x10] sm:$0xf]
    %v544 = vld [vmem:[%s538 + $0x14] sm:$0xf]
    %v545 = vld [vmem:[%s538 + $0x18] sm:$0xf]
    %v546 = vld [vmem:[%s538 + $0x1c] sm:$0xf]
    %v547 = vld [vmem:[%s538 + $0x20] sm:$0xf]
    %v548 = vld [vmem:[%s538 + $0x24] sm:$0xf]
    %v549 = vld [vmem:[%s538 + $0x28] sm:$0xf]
    %v550 = vld [vmem:[%s538 + $0x2c] sm:$0xf]
    %v551 = vld [vmem:[%s538 + $0x30] sm:$0xf]
    %v552 = vld [vmem:[%s538 + $0x34] sm:$0xf]
    %v553 = vld [vmem:[%s538 + $0x38] sm:$0xf]
    %v554 = vld [vmem:[%s538 + $0x3c] sm:$0xf]
    %v560 = vunpack.c.l.b16 %v515
    %v561 = vunpack.c.l.b16 %v516
    %v562 = vunpack.c.l.b16 %v517
    %v563 = vunpack.c.l.b16 %v518
    %v564 = vunpack.c.l.b16 %v520
    %v565 = vpack.c.b16 %v561, %v560
    %v566 = vpack.c.b16 %v563, %v562
    %v567 = vpack.c.b16 %v564, %v564
    %v569 = vshrl.u32 %v565, 16
    %v571 = vshll.u32 %v565, 16
    %v573 = vrot.slane %v571, 1
    %v574 = vor.u32 %v569, %v573
    %v576 = vshll.u32 %v566, 16
    %v578 = vrot.slane %v576, 1
    %v579 = vsel %vm212, %v574, %v578
    %v580 = vshrl.u32 %v566, 16
    %v582 = vor.u32 %v580, %v578
    %v584 = vshll.u32 %v567, 16
    %v586 = vrot.slane %v584, 1
    %v587 = vsel %vm212, %v582, %v586
    %v588 = vshrl.u32 %v567, 16
    %v590 = vor.u32 %v588, %v586
    %v610 = vunpack.c.l.b16 %v539
    %v611 = vunpack.c.l.b16 %v540
    %v612 = vunpack.c.l.b16 %v541
    %v613 = vunpack.c.l.b16 %v542
    %v614 = vunpack.c.l.b16 %v543
    %v615 = vunpack.c.l.b16 %v544
    %v616 = vunpack.c.l.b16 %v545
    %v617 = vunpack.c.l.b16 %v546
    %v618 = vunpack.c.l.b16 %v547
    %v619 = vunpack.c.l.b16 %v548
    %v620 = vunpack.c.l.b16 %v549
    %v621 = vunpack.c.l.b16 %v550
    %v622 = vunpack.c.l.b16 %v551
    %v623 = vunpack.c.l.b16 %v552
    %v624 = vunpack.c.l.b16 %v553
    %v625 = vunpack.c.l.b16 %v554
    %v626 = vpack.c.b16 %v611, %v610
    %v627 = vpack.c.b16 %v613, %v612
    %v628 = vpack.c.b16 %v615, %v614
    %v629 = vpack.c.b16 %v617, %v616
    %v630 = vpack.c.b16 %v619, %v618
    %v631 = vpack.c.b16 %v621, %v620
    %v632 = vpack.c.b16 %v623, %v622
    %v633 = vpack.c.b16 %v625, %v624
    %642 = vmatpush.bf16.msra.mxu0 %v633
    %643 = vmatpush.bf16.msra.mxu0 %v632
    %644 = vmatpush.bf16.msra.mxu0 %v631
    %645 = vmatpush.bf16.msra.mxu0 %v630
    %646 = vmatpush.bf16.msra.mxu0 %v629
    %647 = vmatpush.bf16.msra.mxu0 %v628
    %648 = vmatpush.bf16.msra.mxu0 %v627
    %649 = vmatpush.bf16.msra.mxu0 %v626
    %650 = vmatmul.bf16.gmra.mxu0 %v579
    %v651 = vpop.f32.mrf.mxu0
    %v652 = vadd.f32 0.0, %v651
    %v653 = vpop.f32.mrf.mxu0
    %v654 = vadd.f32 0.0, %v653
    %655 = vmatmul.bf16.gmra.mxu0 %v587
    %v656 = vpop.f32.mrf.mxu0
    %v657 = vadd.f32 0.0, %v656
    %v658 = vpop.f32.mrf.mxu0
    %v659 = vadd.f32 0.0, %v658
    %660 = vmatmul.bf16.gmra.mxu0 %v590
    %v661 = vpop.f32.mrf.mxu0
    %v662 = vadd.f32 0.0, %v661
    %v663 = vpop.f32.mrf.mxu0
    %664 = vdwg.mxu0
    %v666 = vunpack.c.l.b16 %v519
    %v667 = vpack.c.b16 %v666, %v666
    %v687 = vunpack.c.l.b16 %v522
    %v688 = vunpack.c.l.b16 %v523
    %v689 = vunpack.c.l.b16 %v524
    %v690 = vunpack.c.l.b16 %v525
    %v691 = vunpack.c.l.b16 %v526
    %v692 = vunpack.c.l.b16 %v527
    %v693 = vunpack.c.l.b16 %v528
    %v694 = vunpack.c.l.b16 %v529
    %v695 = vunpack.c.l.b16 %v530
    %v696 = vunpack.c.l.b16 %v531
    %v697 = vunpack.c.l.b16 %v532
    %v698 = vunpack.c.l.b16 %v533
    %v699 = vunpack.c.l.b16 %v534
    %v700 = vunpack.c.l.b16 %v535
    %v701 = vunpack.c.l.b16 %v536
    %v702 = vunpack.c.l.b16 %v537
    %v703 = vpack.c.b16 %v688, %v687
    %v704 = vpack.c.b16 %v690, %v689
    %v705 = vpack.c.b16 %v692, %v691
    %v706 = vpack.c.b16 %v694, %v693
    %v707 = vpack.c.b16 %v696, %v695
    %v708 = vpack.c.b16 %v698, %v697
    %v709 = vpack.c.b16 %v700, %v699
    %v710 = vpack.c.b16 %v702, %v701
    %719 = vmatpush.bf16.msra.mxu0 %v710
    %720 = vmatpush.bf16.msra.mxu0 %v709
    %721 = vmatpush.bf16.msra.mxu0 %v708
    %722 = vmatpush.bf16.msra.mxu0 %v707
    %723 = vmatpush.bf16.msra.mxu0 %v706
    %724 = vmatpush.bf16.msra.mxu0 %v705
    %725 = vmatpush.bf16.msra.mxu0 %v704
    %726 = vmatpush.bf16.msra.mxu0 %v703
    %727 = vmatmul.bf16.gmra.mxu0 %v565
    %v728 = vpop.f32.mrf.mxu0
    %v729 = vadd.f32 %v652, %v728
    %v730 = vpop.f32.mrf.mxu0
    %v731 = vadd.f32 %v654, %v730
    %732 = vmatmul.bf16.gmra.mxu0 %v566
    %v733 = vpop.f32.mrf.mxu0
    %v734 = vadd.f32 %v657, %v733
    %v735 = vpop.f32.mrf.mxu0
    %v736 = vadd.f32 %v659, %v735
    %737 = vmatmul.bf16.gmra.mxu0 %v667
    %v738 = vpop.f32.mrf.mxu0
    %v739 = vadd.f32 %v662, %v738
    %v740 = vpop.f32.mrf.mxu0
    %741 = vdwg.mxu0
    %s742 = scalar_lea.vmem [#allocation9], 128
    %v743 = vld [vmem:[%s742] sm:$0xf]
    %v744 = vld [vmem:[%s742 + $0x4] sm:$0xf]
    %v745 = vld [vmem:[%s742 + $0x8] sm:$0xf]
    %v746 = vld [vmem:[%s742 + $0xc] sm:$0xf]
    %v747 = vld [vmem:[%s742 + $0x10] sm:$0xf]
    %v748 = vld [vmem:[%s742 + $0x14] sm:$0xf]
    %v749 = vld [vmem:[%s742 + $0x18] sm:$0xf]
    %v750 = vld [vmem:[%s742 + $0x1c] sm:$0xf]
    %v751 = vld [vmem:[%s742 + $0x20] sm:$0xf]
    %v752 = vld [vmem:[%s742 + $0x24] sm:$0xf]
    %v753 = vld [vmem:[%s742 + $0x28] sm:$0xf]
    %v754 = vld [vmem:[%s742 + $0x2c] sm:$0xf]
    %v755 = vld [vmem:[%s742 + $0x30] sm:$0xf]
    %v756 = vld [vmem:[%s742 + $0x34] sm:$0xf]
    %v757 = vld [vmem:[%s742 + $0x38] sm:$0xf]
    %v758 = vld [vmem:[%s742 + $0x3c] sm:$0xf]
    %v760 = vunpack.c.l.b16 %v521
    %v761 = vpack.c.b16 %v561, %v760
    %v762 = vrot.slane %v761, 1
    %v763 = vrot.slane %v566, 1
    %v764 = vsel %vm362, %v762, %v763
    %v765 = vrot.slane %v567, 1
    %v766 = vsel %vm362, %v763, %v765
    %v786 = vunpack.c.l.b16 %v743
    %v787 = vunpack.c.l.b16 %v744
    %v788 = vunpack.c.l.b16 %v745
    %v789 = vunpack.c.l.b16 %v746
    %v790 = vunpack.c.l.b16 %v747
    %v791 = vunpack.c.l.b16 %v748
    %v792 = vunpack.c.l.b16 %v749
    %v793 = vunpack.c.l.b16 %v750
    %v794 = vunpack.c.l.b16 %v751
    %v795 = vunpack.c.l.b16 %v752
    %v796 = vunpack.c.l.b16 %v753
    %v797 = vunpack.c.l.b16 %v754
    %v798 = vunpack.c.l.b16 %v755
    %v799 = vunpack.c.l.b16 %v756
    %v800 = vunpack.c.l.b16 %v757
    %v801 = vunpack.c.l.b16 %v758
    %v802 = vpack.c.b16 %v787, %v786
    %v803 = vpack.c.b16 %v789, %v788
    %v804 = vpack.c.b16 %v791, %v790
    %v805 = vpack.c.b16 %v793, %v792
    %v806 = vpack.c.b16 %v795, %v794
    %v807 = vpack.c.b16 %v797, %v796
    %v808 = vpack.c.b16 %v799, %v798
    %v809 = vpack.c.b16 %v801, %v800
    %818 = vmatpush.bf16.msra.mxu0 %v809
    %819 = vmatpush.bf16.msra.mxu0 %v808
    %820 = vmatpush.bf16.msra.mxu0 %v807
    %821 = vmatpush.bf16.msra.mxu0 %v806
    %822 = vmatpush.bf16.msra.mxu0 %v805
    %823 = vmatpush.bf16.msra.mxu0 %v804
    %824 = vmatpush.bf16.msra.mxu0 %v803
    %825 = vmatpush.bf16.msra.mxu0 %v802
    %826 = vmatmul.bf16.gmra.mxu0 %v764
    %v827 = vpop.f32.mrf.mxu0
    %v828 = vadd.f32 0.0, %v827
    %v829 = vpop.f32.mrf.mxu0
    %v830 = vadd.f32 0.0, %v829
    %831 = vmatmul.bf16.gmra.mxu0 %v766
    %v832 = vpop.f32.mrf.mxu0
    %v833 = vadd.f32 0.0, %v832
    %v834 = vpop.f32.mrf.mxu0
    %v835 = vadd.f32 0.0, %v834
    %836 = vmatmul.bf16.gmra.mxu0 %v765
    %v837 = vpop.f32.mrf.mxu0
    %v838 = vadd.f32 0.0, %v837
    %v839 = vpop.f32.mrf.mxu0
    %840 = vdwg.mxu0
    %v841 = vadd.f32 %v729, %v828
    %v842 = vadd.f32 %v731, %v830
    %v843 = vadd.f32 %v734, %v833
    %v844 = vadd.f32 %v736, %v835
    %v845 = vadd.f32 %v739, %v838
    %v846 = vld [vmem:[%s4] sm:$0x1]
    %v848 = vperm.slane %v846, 0
    %v850 = vadd.f32 %v841, %v848
    %v851 = vadd.f32 %v842, %v848
    %v852 = vmax.f32 %v850, 0.0
    %v853 = vmax.f32 %v851, 0.0
    %854 = vst [vmem:[#allocation10] sm:$0xff] %v852
    %855 = vst [vmem:[#allocation10 + $0x8] sm:$0xff] %v853
    %v856 = vadd.f32 %v843, %v848
    %v857 = vadd.f32 %v844, %v848
    %v858 = vadd.f32 %v845, %v848
    %v859 = vmax.f32 %v856, 0.0
    %v860 = vmax.f32 %v857, 0.0
    %v861 = vmax.f32 %v858, 0.0
    %s862 = scalar_lea.vmem [#allocation10], 16
    %863 = vst [vmem:[%s862 - $0x2] sm:$0xfc] %v859
    %864 = vst [vmem:[%s862 + $0x6] sm:$0xff] %v860
    %865 = vst [vmem:[%s862 + $0xe] sm:$0x3] %v861
    // Predicated region
    $region34: #{tpu_custom_call.1} parent=1 // pred_check
      _
    $region35: #{tpu_custom_call.1} parent=1 // pred_check_branch
      %867 = sbr.rel (0) target = $region37
    $region36: #{tpu_custom_call.1} parent=1 // pred_region
      %869 = vsyncadd [#allocation6], 0
      %s870 = sshll.u32 [#allocation10], 4
      %s871 = int_to_ptr.vmem [resolvable:$true] %s870
      %s872 = sshll.u32 %s5, 4
      %s873 = int_to_ptr.hbm [resolvable:$true] %s872
      %878 = dma.vmem_to_hbm [thread:$0]  %s871, 512, %s873, [#allocation6], 128, 128, 8
    $region37: #{tpu_custom_call.1} parent=1 // pred_fallthru
      _
    // Predicated region
    $region38: #{tpu_custom_call.1} parent=1 // pred_check
      _
    $region39: #{tpu_custom_call.1} parent=1 // pred_check_branch
      %880 = sbr.rel (0) target = $region41
    $region40: #{tpu_custom_call.1} parent=1 // pred_region
      %882 = dma.done [#allocation6], 512
    $region41: #{tpu_custom_call.1} parent=1 // pred_fallthru
      _
    %883 = vsyncpa [#allocation5], 1
    %884 = vsyncpa [#allocation8], 1
    %885 = vsyncpa [#allocation6], 1

</llo_original>
